<compile_context>
chip_gen: v5e
topology: v5e:2x2
jax: 0.10.0
libtpu: 0.0.40
codegen_flags: <defaults>
</compile_context>

<pallas_src>
import functools

import numpy as np
import jax
import jax.numpy as jnp
from jax.experimental import pallas as pl
from jax.experimental.pallas import tpu as pltpu


# ---------------------------------------------------------------------------
# Pass 1: in_proj -> depthwise (K,1)/(1,K) convs -> fused sigmoid gates ->
#         gated sum -> out_proj -> residual, plus per-batch BN partial moments.
# Kernel layout: (channels, H*W) — channels on sublanes, spatial on lanes.
# ---------------------------------------------------------------------------
def _stage1_kernel(H, W,
                   x_ref, row_ref, col_ref,
                   w_in_ref, b_in_ref, wv_ref, bv_ref, wh_ref, bh_ref,
                   wg_ref, bg_ref, wout_ref, bout_ref,
                   z_ref, ssum_ref, ssq_ref):
    K = wv_ref.shape[1]
    P = K // 2
    hh = wv_ref.shape[0]
    HW = H * W

    x2 = x_ref[0]                                        # (C, HW) f32
    row = jnp.broadcast_to(row_ref[...], (hh, HW))       # flat index // W
    col = jnp.broadcast_to(col_ref[...], (hh, HW))       # flat index %  W

    # in_proj for ALL heads at once (block-diagonal weight): bf16 MXU, f32 acc.
    xp = jnp.dot(w_in_ref[...], x2.astype(jnp.bfloat16),
                 preferred_element_type=jnp.float32) + b_in_ref[...]

    wv = wv_ref[...]                                     # (hh, K)
    wh = wh_ref[...]

    # Depthwise convs.  Vertical taps shift the flat spatial index by d*W,
    # horizontal taps by d; both are lane rolls (XLU) + boundary masks — no
    # padded scratch, no materialized shifted copies.
    v = xp * wv[:, P:P + 1]
    h_ = xp * wh[:, P:P + 1]
    for k in range(K):
        d = k - P
        if d == 0:
            continue
        v_tap = pltpu.roll(xp, shift=(-d * W) % HW, axis=1)
        v_ok = (row + d >= 0) & (row + d < H)
        v = v + jnp.where(v_ok, v_tap, 0.0) * wv[:, k:k + 1]

        h_tap = pltpu.roll(xp, shift=(-d) % HW, axis=1)
        h_ok = (col + d >= 0) & (col + d < W)
        h_ = h_ + jnp.where(h_ok, h_tap, 0.0) * wh[:, k:k + 1]
    v = v + bv_ref[...]
    h_ = h_ + bh_ref[...]

    # Both gate 1x1 convs fused into ONE block-diagonal MXU matmul:
    #   [gv; gh] = sigmoid( blockdiag(W_gv, W_gh) @ [h; v] + [b_gv; b_gh] )
    g_in = jnp.concatenate([h_, v], axis=0).astype(jnp.bfloat16)
    g = jnp.dot(wg_ref[...], g_in, preferred_element_type=jnp.float32) + bg_ref[...]
    g = 0.5 * (jnp.tanh(0.5 * g) + 1.0)                  # sigmoid as 1 EUP tanh
    mixed = v * g[:hh] + h_ * g[hh:]

    # out_proj + residual.
    z = jnp.dot(wout_ref[...], mixed.astype(jnp.bfloat16),
                preferred_element_type=jnp.float32) + bout_ref[...] + x2

    z_ref[0] = z
    # BatchNorm moments fused into this pass: per-batch per-channel partials.
    ssum_ref[0] = jnp.sum(z, axis=1, keepdims=True)
    ssq_ref[0] = jnp.sum(z * z, axis=1, keepdims=True)


# ---------------------------------------------------------------------------
# Pass 2: combine per-batch partial moments, apply BatchNorm2d
# (training-mode batch statistics, biased variance, eps=1e-5).
# ---------------------------------------------------------------------------
def _stage2_kernel(n_elems, eps,
                   z_ref, ssum_ref, ssq_ref, gamma_ref, beta_ref, y_ref):
    nb = ssum_ref.shape[0]
    tot = ssum_ref[0]
    tot2 = ssq_ref[0]
    for b in range(1, nb):
        tot = tot + ssum_ref[b]
        tot2 = tot2 + ssq_ref[b]
    inv_n = 1.0 / n_elems
    mean = tot * inv_n                                   # (C, 1)
    var = tot2 * inv_n - mean * mean
    inv_std = jax.lax.rsqrt(var + eps)
    scale = gamma_ref[...] * inv_std
    shift = beta_ref[...] - mean * scale
    y_ref[0] = z_ref[0] * scale + shift


# ---------------------------------------------------------------------------
# Parameter folding (head-major block-diagonal weights).  Call once; reuse.
# ---------------------------------------------------------------------------
def build_operands(params, num_heads):
    hidden = params["w_in"].shape[0]
    K = params["w_v"].shape[2]
    hh = num_heads * hidden
    eye = jnp.eye(num_heads, dtype=jnp.float32)

    w_gv_bd = jnp.einsum("hg,hoc->hogc", eye, params["w_gv"]).reshape(hh, hh)
    w_gh_bd = jnp.einsum("hg,hoc->hogc", eye, params["w_gh"]).reshape(hh, hh)
    w_g = (jnp.zeros((2 * hh, 2 * hh), jnp.float32)
           .at[:hh, :hh].set(w_gv_bd)
           .at[hh:, hh:].set(w_gh_bd))

    return {
        # bf16 MXU operands (f32 accumulation happens inside the kernel).
        "w_in": jnp.kron(eye, params["w_in"]).astype(jnp.bfloat16),   # (hh, C)
        "w_g": w_g.astype(jnp.bfloat16),                              # (2hh, 2hh)
        "w_out": params["w_out"].astype(jnp.bfloat16),                # (C, C)
        # f32 per-channel columns / depthwise taps.
        "b_in": jnp.tile(params["b_in"], num_heads).reshape(hh, 1),
        "wv": params["w_v"].reshape(hh, K),
        "bv": params["b_v"].reshape(hh, 1),
        "wh": params["w_h"].reshape(hh, K),
        "bh": params["b_h"].reshape(hh, 1),
        "b_g": jnp.concatenate([params["b_gv"].reshape(hh, 1),
                                params["b_gh"].reshape(hh, 1)], axis=0),
        "b_out": params["b_out"].reshape(-1, 1),
        "gamma": params["gamma"].reshape(-1, 1),
        "beta": params["beta"].reshape(-1, 1),
    }


# ---------------------------------------------------------------------------
# Forward wrapper: two pallas_calls, no layout transposes (metadata reshapes only).
# ---------------------------------------------------------------------------
def mh_mamba_block(x_nchw, ops, num_heads):
    B, C, H, W = x_nchw.shape
    HW = H * W
    hh, K = ops["wv"].shape
    assert hh == C, "module requires head_dim * expansion * num_heads == dim"
    eps = 1e-5

    x_flat = x_nchw.reshape(B, C, HW)                    # free metadata reshape

    # Flat-index -> (row, col) lookup tables (trace-time constants, 1 KiB each).
    flat = np.arange(HW, dtype=np.int32)
    row_idx = jnp.asarray((flat // W).reshape(1, HW))
    col_idx = jnp.asarray((flat % W).reshape(1, HW))

    def const2d(shape):
        return pl.BlockSpec(shape, lambda b: (0, 0))     # VMEM-resident operand

    cparams = pltpu.CompilerParams(
        dimension_semantics=("parallel",),               # v7x: batch over 2 TCs
        vmem_limit_bytes=32 * 1024 * 1024)               # fits v7x's 64 MiB VMEM

    # ---- Pass 1: fused block + per-batch BN partial moments -----------------
    z, ssum, ssq = pl.pallas_call(
        functools.partial(_stage1_kernel, H, W),
        grid=(B,),
        in_specs=[
            pl.BlockSpec((1, C, HW), lambda b: (b, 0, 0)),    # x
            const2d((1, HW)), const2d((1, HW)),               # row / col tables
            const2d((hh, C)), const2d((hh, 1)),               # in_proj
            const2d((hh, K)), const2d((hh, 1)),               # vertical conv
            const2d((hh, K)), const2d((hh, 1)),               # horizontal conv
            const2d((2 * hh, 2 * hh)), const2d((2 * hh, 1)),  # fused gates
            const2d((C, hh)), const2d((C, 1)),                # out_proj
        ],
        out_specs=(
            pl.BlockSpec((1, C, HW), lambda b: (b, 0, 0)),
            pl.BlockSpec((1, C, 1), lambda b: (b, 0, 0)),
            pl.BlockSpec((1, C, 1), lambda b: (b, 0, 0)),
        ),
        out_shape=(
            jax.ShapeDtypeStruct((B, C, HW), jnp.float32),    # z = out_proj + x
            jax.ShapeDtypeStruct((B, C, 1), jnp.float32),     # per-batch sum
            jax.ShapeDtypeStruct((B, C, 1), jnp.float32),     # per-batch sum sq
        ),
        compiler_params=cparams,
    )(x_flat, row_idx, col_idx,
      ops["w_in"], ops["b_in"], ops["wv"], ops["bv"], ops["wh"], ops["bh"],
      ops["w_g"], ops["b_g"], ops["w_out"], ops["b_out"])

    # ---- Pass 2: exact BatchNorm2d over (B, H, W) ----------------------------
    y = pl.pallas_call(
        functools.partial(_stage2_kernel, float(B * HW), eps),
        grid=(B,),
        in_specs=[
            pl.BlockSpec((1, C, HW), lambda b: (b, 0, 0)),    # z
            pl.BlockSpec((B, C, 1), lambda b: (0, 0, 0)),     # sum partials
            pl.BlockSpec((B, C, 1), lambda b: (0, 0, 0)),     # sumsq partials
            const2d((C, 1)), const2d((C, 1)),                 # gamma, beta
        ],
        out_specs=pl.BlockSpec((1, C, HW), lambda b: (b, 0, 0)),
        out_shape=jax.ShapeDtypeStruct((B, C, HW), jnp.float32),
        compiler_params=cparams,
    )(z, ssum, ssq, ops["gamma"], ops["beta"])

    return y.reshape(B, C, H, W)                         # free metadata reshape


# ---------------------------------------------------------------------------
# Pure-JAX f32 reference (mirrors the PyTorch module) for correctness checking.
# ---------------------------------------------------------------------------
def reference(x, params, num_heads, K):
    B, C, H, W = x.shape
    hd = C // num_heads
    P = K // 2
    outs = []
    for i in range(num_heads):
        xi = x[:, i * hd:(i + 1) * hd]
        xp = (jnp.einsum("oc,bchw->bohw", params["w_in"], xi)
              + params["b_in"][None, :, None, None])
        padv = jnp.pad(xp, ((0, 0), (0, 0), (P, P), (0, 0)))
        v = sum(padv[:, :, k:k + H, :] * params["w_v"][i, :, k][None, :, None, None]
                for k in range(K)) + params["b_v"][i][None, :, None, None]
        padh = jnp.pad(xp, ((0, 0), (0, 0), (0, 0), (P, P)))
        h = sum(padh[:, :, :, k:k + W] * params["w_h"][i, :, k][None, :, None, None]
                for k in range(K)) + params["b_h"][i][None, :, None, None]
        gv = jax.nn.sigmoid(jnp.einsum("oc,bchw->bohw", params["w_gv"][i], h)
                            + params["b_gv"][i][None, :, None, None])
        gh = jax.nn.sigmoid(jnp.einsum("oc,bchw->bohw", params["w_gh"][i], v)
                            + params["b_gh"][i][None, :, None, None])
        outs.append(v * gv + h * gh)
    out = jnp.concatenate(outs, axis=1)
    z = (jnp.einsum("oc,bchw->bohw", params["w_out"], out)
         + params["b_out"][None, :, None, None] + x)
    mean = jnp.mean(z, axis=(0, 2, 3), keepdims=True)
    var = jnp.mean((z - mean) ** 2, axis=(0, 2, 3), keepdims=True)
    return ((z - mean) / jnp.sqrt(var + 1e-5) * params["gamma"][None, :, None, None]
            + params["beta"][None, :, None, None])


# ---------------------------------------------------------------------------
# Deterministic synthetic parameters (conv-style (out, in) weight layouts).
# ---------------------------------------------------------------------------
def init_params(key, dim, num_heads, expansion, K):
    head_dim = dim // num_heads
    hidden = head_dim * expansion
    ks = jax.random.split(key, 12)

    def n(k, shape, scale=0.1):
        return jax.random.normal(k, shape, jnp.float32) * scale

    return {
        "w_in": n(ks[0], (hidden, head_dim)),        # Conv2d(head_dim, hidden, 1)
        "b_in": n(ks[1], (hidden,)),
        "w_v": n(ks[2], (num_heads, hidden, K)),     # depthwise (K,1) per head
        "b_v": n(ks[3], (num_heads, hidden)),
        "w_h": n(ks[4], (num_heads, hidden, K)),     # depthwise (1,K) per head
        "b_h": n(ks[5], (num_heads, hidden)),
        "w_gv": n(ks[6], (num_heads, hidden, hidden)),
        "b_gv": n(ks[7], (num_heads, hidden)),
        "w_gh": n(ks[8], (num_heads, hidden, hidden)),
        "b_gh": n(ks[9], (num_heads, hidden)),
        "w_out": n(ks[10], (dim, dim)),
        "b_out": n(ks[11], (dim,)),
        "gamma": jnp.ones((dim,), jnp.float32),      # BatchNorm2d weight init
        "beta": jnp.zeros((dim,), jnp.float32),      # BatchNorm2d bias init
    }


if __name__ == "__main__":
    dim, num_heads, expansion, K = 32, 4, 1, 5       # expansion=1 (see NOTE above)
    B, H, W = 2, 16, 16

    key = jax.random.PRNGKey(0)
    kx, kp = jax.random.split(key)
    x = jax.random.normal(kx, (B, dim, H, W), jnp.float32)
    params = init_params(kp, dim, num_heads, expansion, K)

    ops = build_operands(params, num_heads)          # hoisted weight folding
    fwd = jax.jit(functools.partial(mh_mamba_block, num_heads=num_heads))

    out = jax.block_until_ready(fwd(x, ops))
    ref = jax.block_until_ready(reference(x, params, num_heads, K))

    assert out.shape == (B, dim, H, W)
    err = float(jnp.max(jnp.abs(out - ref)))
    # bf16 MXU operands (requested perf change) loosen accuracy vs the f32
    # reference to ~1e-3 max abs error; 1e-2 keeps ample margin.
    assert jnp.allclose(out, ref, atol=1e-2, rtol=1e-2), \
        f"mismatch: max abs err {err}"

    print("KERNEL_OK")
</pallas_src>

<mosaic_0001>
module attributes {stable_mosaic.version = 11 : i64} {
  func.func @_stage1_kernel(%arg0: i32, %arg1: memref<1x32x256xf32, #tpu.memory_space<vmem>>, %arg2: memref<1x256xi32, #tpu.memory_space<vmem>>, %arg3: memref<1x256xi32, #tpu.memory_space<vmem>>, %arg4: memref<32x32xbf16, #tpu.memory_space<vmem>>, %arg5: memref<32x1xf32, #tpu.memory_space<vmem>>, %arg6: memref<32x5xf32, #tpu.memory_space<vmem>>, %arg7: memref<32x1xf32, #tpu.memory_space<vmem>>, %arg8: memref<32x5xf32, #tpu.memory_space<vmem>>, %arg9: memref<32x1xf32, #tpu.memory_space<vmem>>, %arg10: memref<64x64xbf16, #tpu.memory_space<vmem>>, %arg11: memref<64x1xf32, #tpu.memory_space<vmem>>, %arg12: memref<32x32xbf16, #tpu.memory_space<vmem>>, %arg13: memref<32x1xf32, #tpu.memory_space<vmem>>, %arg14: memref<1x32x256xf32, #tpu.memory_space<vmem>>, %arg15: memref<1x32x1xf32, #tpu.memory_space<vmem>>, %arg16: memref<1x32x1xf32, #tpu.memory_space<vmem>>) attributes {dimension_semantics = [#tpu.dimension_semantics<parallel>], iteration_bounds = array<i64: 2>, scalar_prefetch = 0 : i64, scratch_operands = 0 : i64, tpu.core_type = #tpu.core_type<tc>, window_params = [{transform_indices = @transform_0, window_bounds = array<i64: 1, 32, 256>}, {pipeline_mode = #tpu.pipeline_mode<synchronous>, transform_indices = @transform_1, window_bounds = array<i64: 1, 256>}, {pipeline_mode = #tpu.pipeline_mode<synchronous>, transform_indices = @transform_2, window_bounds = array<i64: 1, 256>}, {pipeline_mode = #tpu.pipeline_mode<synchronous>, transform_indices = @transform_3, window_bounds = array<i64: 32, 32>}, {pipeline_mode = #tpu.pipeline_mode<synchronous>, transform_indices = @transform_4, window_bounds = array<i64: 32, 1>}, {pipeline_mode = #tpu.pipeline_mode<synchronous>, transform_indices = @transform_5, window_bounds = array<i64: 32, 5>}, {pipeline_mode = #tpu.pipeline_mode<synchronous>, transform_indices = @transform_6, window_bounds = array<i64: 32, 1>}, {pipeline_mode = #tpu.pipeline_mode<synchronous>, transform_indices = @transform_7, window_bounds = array<i64: 32, 5>}, {pipeline_mode = #tpu.pipeline_mode<synchronous>, transform_indices = @transform_8, window_bounds = array<i64: 32, 1>}, {pipeline_mode = #tpu.pipeline_mode<synchronous>, transform_indices = @transform_9, window_bounds = array<i64: 64, 64>}, {pipeline_mode = #tpu.pipeline_mode<synchronous>, transform_indices = @transform_10, window_bounds = array<i64: 64, 1>}, {pipeline_mode = #tpu.pipeline_mode<synchronous>, transform_indices = @transform_11, window_bounds = array<i64: 32, 32>}, {pipeline_mode = #tpu.pipeline_mode<synchronous>, transform_indices = @transform_12, window_bounds = array<i64: 32, 1>}, {transform_indices = @transform_13, window_bounds = array<i64: 1, 32, 256>}, {transform_indices = @transform_14, window_bounds = array<i64: 1, 32, 1>}, {transform_indices = @transform_15, window_bounds = array<i64: 1, 32, 1>}]} {
    %c0 = arith.constant 0 : index
    %c0_0 = arith.constant 0 : index
    %c0_1 = arith.constant 0 : index
    %0 = vector.load %arg1[%c0, %c0_0, %c0_1] : memref<1x32x256xf32, #tpu.memory_space<vmem>>, vector<1x32x256xf32>
    %1 = vector.shape_cast %0 : vector<1x32x256xf32> to vector<32x256xf32>
    %c0_2 = arith.constant 0 : index
    %c0_3 = arith.constant 0 : index
    %2 = vector.load %arg2[%c0_2, %c0_3] : memref<1x256xi32, #tpu.memory_space<vmem>>, vector<1x256xi32>
    %3 = vector.shape_cast %2 : vector<1x256xi32> to vector<1x256xi32>
    %4 = vector.broadcast %3 : vector<1x256xi32> to vector<32x256xi32>
    %c0_4 = arith.constant 0 : index
    %c0_5 = arith.constant 0 : index
    %5 = vector.load %arg3[%c0_4, %c0_5] : memref<1x256xi32, #tpu.memory_space<vmem>>, vector<1x256xi32>
    %6 = vector.shape_cast %5 : vector<1x256xi32> to vector<1x256xi32>
    %7 = vector.broadcast %6 : vector<1x256xi32> to vector<32x256xi32>
    %c0_6 = arith.constant 0 : index
    %c0_7 = arith.constant 0 : index
    %8 = vector.load %arg4[%c0_6, %c0_7] : memref<32x32xbf16, #tpu.memory_space<vmem>>, vector<32x32xbf16>
    %9 = arith.truncf %1 : vector<32x256xf32> to vector<32x256xbf16>
    %cst = arith.constant dense<0.000000e+00> : vector<32x256xf32>
    %10 = tpu.matmul %8, %9, %cst {dimension_numbers = #tpu.dot_dimension_numbers<[1], [0], [0], [1], [0, 0, 1, 1], [], []>} : vector<32x32xbf16>, vector<32x256xbf16>, vector<32x256xf32> -> vector<32x256xf32>
    %c0_8 = arith.constant 0 : index
    %c0_9 = arith.constant 0 : index
    %11 = vector.load %arg5[%c0_8, %c0_9] : memref<32x1xf32, #tpu.memory_space<vmem>>, vector<32x1xf32>
    %12 = vector.broadcast %11 : vector<32x1xf32> to vector<32x256xf32>
    %13 = arith.addf %10, %12 : vector<32x256xf32>
    %c0_10 = arith.constant 0 : index
    %c0_11 = arith.constant 0 : index
    %14 = vector.load %arg6[%c0_10, %c0_11] : memref<32x5xf32, #tpu.memory_space<vmem>>, vector<32x5xf32>
    %c0_12 = arith.constant 0 : index
    %c0_13 = arith.constant 0 : index
    %15 = vector.load %arg8[%c0_12, %c0_13] : memref<32x5xf32, #tpu.memory_space<vmem>>, vector<32x5xf32>
    %16 = vector.extract_strided_slice %14 {offsets = [0, 2], sizes = [32, 1], strides = [1, 1]} : vector<32x5xf32> to vector<32x1xf32>
    %17 = vector.broadcast %16 : vector<32x1xf32> to vector<32x256xf32>
    %18 = arith.mulf %13, %17 : vector<32x256xf32>
    %19 = vector.extract_strided_slice %15 {offsets = [0, 2], sizes = [32, 1], strides = [1, 1]} : vector<32x5xf32> to vector<32x1xf32>
    %20 = vector.broadcast %19 : vector<32x1xf32> to vector<32x256xf32>
    %21 = arith.mulf %13, %20 : vector<32x256xf32>
    %c32_i32 = arith.constant 32 : i32
    %22 = tpu.dynamic_rotate %13 by %c32_i32 dim 1 : vector<32x256xf32>, i32 -> vector<32x256xf32>
    %c-2_i32 = arith.constant -2 : i32
    %23 = vector.broadcast %c-2_i32 : i32 to vector<32x256xi32>
    %24 = arith.addi %4, %23 : vector<32x256xi32>
    %c0_i32 = arith.constant 0 : i32
    %25 = vector.broadcast %c0_i32 : i32 to vector<32x256xi32>
    %26 = arith.cmpi sge, %24, %25 : vector<32x256xi32>
    %c-2_i32_14 = arith.constant -2 : i32
    %27 = vector.broadcast %c-2_i32_14 : i32 to vector<32x256xi32>
    %28 = arith.addi %4, %27 : vector<32x256xi32>
    %c16_i32 = arith.constant 16 : i32
    %29 = vector.broadcast %c16_i32 : i32 to vector<32x256xi32>
    %30 = arith.cmpi slt, %28, %29 : vector<32x256xi32>
    %31 = arith.andi %26, %30 : vector<32x256xi1>
    %cst_15 = arith.constant 0.000000e+00 : f32
    %32 = vector.broadcast %cst_15 : f32 to vector<32x256xf32>
    %33 = arith.select %31, %22, %32 : vector<32x256xi1>, vector<32x256xf32>
    %34 = vector.extract_strided_slice %14 {offsets = [0, 0], sizes = [32, 1], strides = [1, 1]} : vector<32x5xf32> to vector<32x1xf32>
    %35 = vector.broadcast %34 : vector<32x1xf32> to vector<32x256xf32>
    %36 = arith.mulf %33, %35 : vector<32x256xf32>
    %37 = arith.addf %18, %36 : vector<32x256xf32>
    %c2_i32 = arith.constant 2 : i32
    %38 = tpu.dynamic_rotate %13 by %c2_i32 dim 1 : vector<32x256xf32>, i32 -> vector<32x256xf32>
    %c-2_i32_16 = arith.constant -2 : i32
    %39 = vector.broadcast %c-2_i32_16 : i32 to vector<32x256xi32>
    %40 = arith.addi %7, %39 : vector<32x256xi32>
    %c0_i32_17 = arith.constant 0 : i32
    %41 = vector.broadcast %c0_i32_17 : i32 to vector<32x256xi32>
    %42 = arith.cmpi sge, %40, %41 : vector<32x256xi32>
    %c-2_i32_18 = arith.constant -2 : i32
    %43 = vector.broadcast %c-2_i32_18 : i32 to vector<32x256xi32>
    %44 = arith.addi %7, %43 : vector<32x256xi32>
    %c16_i32_19 = arith.constant 16 : i32
    %45 = vector.broadcast %c16_i32_19 : i32 to vector<32x256xi32>
    %46 = arith.cmpi slt, %44, %45 : vector<32x256xi32>
    %47 = arith.andi %42, %46 : vector<32x256xi1>
    %cst_20 = arith.constant 0.000000e+00 : f32
    %48 = vector.broadcast %cst_20 : f32 to vector<32x256xf32>
    %49 = arith.select %47, %38, %48 : vector<32x256xi1>, vector<32x256xf32>
    %50 = vector.extract_strided_slice %15 {offsets = [0, 0], sizes = [32, 1], strides = [1, 1]} : vector<32x5xf32> to vector<32x1xf32>
    %51 = vector.broadcast %50 : vector<32x1xf32> to vector<32x256xf32>
    %52 = arith.mulf %49, %51 : vector<32x256xf32>
    %53 = arith.addf %21, %52 : vector<32x256xf32>
    %c16_i32_21 = arith.constant 16 : i32
    %54 = tpu.dynamic_rotate %13 by %c16_i32_21 dim 1 : vector<32x256xf32>, i32 -> vector<32x256xf32>
    %c-1_i32 = arith.constant -1 : i32
    %55 = vector.broadcast %c-1_i32 : i32 to vector<32x256xi32>
    %56 = arith.addi %4, %55 : vector<32x256xi32>
    %c0_i32_22 = arith.constant 0 : i32
    %57 = vector.broadcast %c0_i32_22 : i32 to vector<32x256xi32>
    %58 = arith.cmpi sge, %56, %57 : vector<32x256xi32>
    %c-1_i32_23 = arith.constant -1 : i32
    %59 = vector.broadcast %c-1_i32_23 : i32 to vector<32x256xi32>
    %60 = arith.addi %4, %59 : vector<32x256xi32>
    %c16_i32_24 = arith.constant 16 : i32
    %61 = vector.broadcast %c16_i32_24 : i32 to vector<32x256xi32>
    %62 = arith.cmpi slt, %60, %61 : vector<32x256xi32>
    %63 = arith.andi %58, %62 : vector<32x256xi1>
    %cst_25 = arith.constant 0.000000e+00 : f32
    %64 = vector.broadcast %cst_25 : f32 to vector<32x256xf32>
    %65 = arith.select %63, %54, %64 : vector<32x256xi1>, vector<32x256xf32>
    %66 = vector.extract_strided_slice %14 {offsets = [0, 1], sizes = [32, 1], strides = [1, 1]} : vector<32x5xf32> to vector<32x1xf32>
    %67 = vector.broadcast %66 : vector<32x1xf32> to vector<32x256xf32>
    %68 = arith.mulf %65, %67 : vector<32x256xf32>
    %69 = arith.addf %37, %68 : vector<32x256xf32>
    %c1_i32 = arith.constant 1 : i32
    %70 = tpu.dynamic_rotate %13 by %c1_i32 dim 1 : vector<32x256xf32>, i32 -> vector<32x256xf32>
    %c-1_i32_26 = arith.constant -1 : i32
    %71 = vector.broadcast %c-1_i32_26 : i32 to vector<32x256xi32>
    %72 = arith.addi %7, %71 : vector<32x256xi32>
    %c0_i32_27 = arith.constant 0 : i32
    %73 = vector.broadcast %c0_i32_27 : i32 to vector<32x256xi32>
    %74 = arith.cmpi sge, %72, %73 : vector<32x256xi32>
    %c-1_i32_28 = arith.constant -1 : i32
    %75 = vector.broadcast %c-1_i32_28 : i32 to vector<32x256xi32>
    %76 = arith.addi %7, %75 : vector<32x256xi32>
    %c16_i32_29 = arith.constant 16 : i32
    %77 = vector.broadcast %c16_i32_29 : i32 to vector<32x256xi32>
    %78 = arith.cmpi slt, %76, %77 : vector<32x256xi32>
    %79 = arith.andi %74, %78 : vector<32x256xi1>
    %cst_30 = arith.constant 0.000000e+00 : f32
    %80 = vector.broadcast %cst_30 : f32 to vector<32x256xf32>
    %81 = arith.select %79, %70, %80 : vector<32x256xi1>, vector<32x256xf32>
    %82 = vector.extract_strided_slice %15 {offsets = [0, 1], sizes = [32, 1], strides = [1, 1]} : vector<32x5xf32> to vector<32x1xf32>
    %83 = vector.broadcast %82 : vector<32x1xf32> to vector<32x256xf32>
    %84 = arith.mulf %81, %83 : vector<32x256xf32>
    %85 = arith.addf %53, %84 : vector<32x256xf32>
    %c240_i32 = arith.constant 240 : i32
    %86 = tpu.dynamic_rotate %13 by %c240_i32 dim 1 : vector<32x256xf32>, i32 -> vector<32x256xf32>
    %c1_i32_31 = arith.constant 1 : i32
    %87 = vector.broadcast %c1_i32_31 : i32 to vector<32x256xi32>
    %88 = arith.addi %4, %87 : vector<32x256xi32>
    %c0_i32_32 = arith.constant 0 : i32
    %89 = vector.broadcast %c0_i32_32 : i32 to vector<32x256xi32>
    %90 = arith.cmpi sge, %88, %89 : vector<32x256xi32>
    %c1_i32_33 = arith.constant 1 : i32
    %91 = vector.broadcast %c1_i32_33 : i32 to vector<32x256xi32>
    %92 = arith.addi %4, %91 : vector<32x256xi32>
    %c16_i32_34 = arith.constant 16 : i32
    %93 = vector.broadcast %c16_i32_34 : i32 to vector<32x256xi32>
    %94 = arith.cmpi slt, %92, %93 : vector<32x256xi32>
    %95 = arith.andi %90, %94 : vector<32x256xi1>
    %cst_35 = arith.constant 0.000000e+00 : f32
    %96 = vector.broadcast %cst_35 : f32 to vector<32x256xf32>
    %97 = arith.select %95, %86, %96 : vector<32x256xi1>, vector<32x256xf32>
    %98 = vector.extract_strided_slice %14 {offsets = [0, 3], sizes = [32, 1], strides = [1, 1]} : vector<32x5xf32> to vector<32x1xf32>
    %99 = vector.broadcast %98 : vector<32x1xf32> to vector<32x256xf32>
    %100 = arith.mulf %97, %99 : vector<32x256xf32>
    %101 = arith.addf %69, %100 : vector<32x256xf32>
    %c255_i32 = arith.constant 255 : i32
    %102 = tpu.dynamic_rotate %13 by %c255_i32 dim 1 : vector<32x256xf32>, i32 -> vector<32x256xf32>
    %c1_i32_36 = arith.constant 1 : i32
    %103 = vector.broadcast %c1_i32_36 : i32 to vector<32x256xi32>
    %104 = arith.addi %7, %103 : vector<32x256xi32>
    %c0_i32_37 = arith.constant 0 : i32
    %105 = vector.broadcast %c0_i32_37 : i32 to vector<32x256xi32>
    %106 = arith.cmpi sge, %104, %105 : vector<32x256xi32>
    %c1_i32_38 = arith.constant 1 : i32
    %107 = vector.broadcast %c1_i32_38 : i32 to vector<32x256xi32>
    %108 = arith.addi %7, %107 : vector<32x256xi32>
    %c16_i32_39 = arith.constant 16 : i32
    %109 = vector.broadcast %c16_i32_39 : i32 to vector<32x256xi32>
    %110 = arith.cmpi slt, %108, %109 : vector<32x256xi32>
    %111 = arith.andi %106, %110 : vector<32x256xi1>
    %cst_40 = arith.constant 0.000000e+00 : f32
    %112 = vector.broadcast %cst_40 : f32 to vector<32x256xf32>
    %113 = arith.select %111, %102, %112 : vector<32x256xi1>, vector<32x256xf32>
    %114 = vector.extract_strided_slice %15 {offsets = [0, 3], sizes = [32, 1], strides = [1, 1]} : vector<32x5xf32> to vector<32x1xf32>
    %115 = vector.broadcast %114 : vector<32x1xf32> to vector<32x256xf32>
    %116 = arith.mulf %113, %115 : vector<32x256xf32>
    %117 = arith.addf %85, %116 : vector<32x256xf32>
    %c224_i32 = arith.constant 224 : i32
    %118 = tpu.dynamic_rotate %13 by %c224_i32 dim 1 : vector<32x256xf32>, i32 -> vector<32x256xf32>
    %c2_i32_41 = arith.constant 2 : i32
    %119 = vector.broadcast %c2_i32_41 : i32 to vector<32x256xi32>
    %120 = arith.addi %4, %119 : vector<32x256xi32>
    %c0_i32_42 = arith.constant 0 : i32
    %121 = vector.broadcast %c0_i32_42 : i32 to vector<32x256xi32>
    %122 = arith.cmpi sge, %120, %121 : vector<32x256xi32>
    %c2_i32_43 = arith.constant 2 : i32
    %123 = vector.broadcast %c2_i32_43 : i32 to vector<32x256xi32>
    %124 = arith.addi %4, %123 : vector<32x256xi32>
    %c16_i32_44 = arith.constant 16 : i32
    %125 = vector.broadcast %c16_i32_44 : i32 to vector<32x256xi32>
    %126 = arith.cmpi slt, %124, %125 : vector<32x256xi32>
    %127 = arith.andi %122, %126 : vector<32x256xi1>
    %cst_45 = arith.constant 0.000000e+00 : f32
    %128 = vector.broadcast %cst_45 : f32 to vector<32x256xf32>
    %129 = arith.select %127, %118, %128 : vector<32x256xi1>, vector<32x256xf32>
    %130 = vector.extract_strided_slice %14 {offsets = [0, 4], sizes = [32, 1], strides = [1, 1]} : vector<32x5xf32> to vector<32x1xf32>
    %131 = vector.broadcast %130 : vector<32x1xf32> to vector<32x256xf32>
    %132 = arith.mulf %129, %131 : vector<32x256xf32>
    %133 = arith.addf %101, %132 : vector<32x256xf32>
    %c254_i32 = arith.constant 254 : i32
    %134 = tpu.dynamic_rotate %13 by %c254_i32 dim 1 : vector<32x256xf32>, i32 -> vector<32x256xf32>
    %c2_i32_46 = arith.constant 2 : i32
    %135 = vector.broadcast %c2_i32_46 : i32 to vector<32x256xi32>
    %136 = arith.addi %7, %135 : vector<32x256xi32>
    %c0_i32_47 = arith.constant 0 : i32
    %137 = vector.broadcast %c0_i32_47 : i32 to vector<32x256xi32>
    %138 = arith.cmpi sge, %136, %137 : vector<32x256xi32>
    %c2_i32_48 = arith.constant 2 : i32
    %139 = vector.broadcast %c2_i32_48 : i32 to vector<32x256xi32>
    %140 = arith.addi %7, %139 : vector<32x256xi32>
    %c16_i32_49 = arith.constant 16 : i32
    %141 = vector.broadcast %c16_i32_49 : i32 to vector<32x256xi32>
    %142 = arith.cmpi slt, %140, %141 : vector<32x256xi32>
    %143 = arith.andi %138, %142 : vector<32x256xi1>
    %cst_50 = arith.constant 0.000000e+00 : f32
    %144 = vector.broadcast %cst_50 : f32 to vector<32x256xf32>
    %145 = arith.select %143, %134, %144 : vector<32x256xi1>, vector<32x256xf32>
    %146 = vector.extract_strided_slice %15 {offsets = [0, 4], sizes = [32, 1], strides = [1, 1]} : vector<32x5xf32> to vector<32x1xf32>
    %147 = vector.broadcast %146 : vector<32x1xf32> to vector<32x256xf32>
    %148 = arith.mulf %145, %147 : vector<32x256xf32>
    %149 = arith.addf %117, %148 : vector<32x256xf32>
    %c0_51 = arith.constant 0 : index
    %c0_52 = arith.constant 0 : index
    %150 = vector.load %arg7[%c0_51, %c0_52] : memref<32x1xf32, #tpu.memory_space<vmem>>, vector<32x1xf32>
    %151 = vector.broadcast %150 : vector<32x1xf32> to vector<32x256xf32>
    %152 = arith.addf %133, %151 : vector<32x256xf32>
    %c0_53 = arith.constant 0 : index
    %c0_54 = arith.constant 0 : index
    %153 = vector.load %arg9[%c0_53, %c0_54] : memref<32x1xf32, #tpu.memory_space<vmem>>, vector<32x1xf32>
    %154 = vector.broadcast %153 : vector<32x1xf32> to vector<32x256xf32>
    %155 = arith.addf %149, %154 : vector<32x256xf32>
    %156 = tpu.concatenate %155, %152 in 0 : vector<32x256xf32>, vector<32x256xf32> -> vector<64x256xf32>
    %157 = arith.truncf %156 : vector<64x256xf32> to vector<64x256xbf16>
    %c0_55 = arith.constant 0 : index
    %c0_56 = arith.constant 0 : index
    %158 = vector.load %arg10[%c0_55, %c0_56] : memref<64x64xbf16, #tpu.memory_space<vmem>>, vector<64x64xbf16>
    %cst_57 = arith.constant dense<0.000000e+00> : vector<64x256xf32>
    %159 = tpu.matmul %158, %157, %cst_57 {dimension_numbers = #tpu.dot_dimension_numbers<[1], [0], [0], [1], [0, 0, 1, 1], [], []>} : vector<64x64xbf16>, vector<64x256xbf16>, vector<64x256xf32> -> vector<64x256xf32>
    %c0_58 = arith.constant 0 : index
    %c0_59 = arith.constant 0 : index
    %160 = vector.load %arg11[%c0_58, %c0_59] : memref<64x1xf32, #tpu.memory_space<vmem>>, vector<64x1xf32>
    %161 = vector.broadcast %160 : vector<64x1xf32> to vector<64x256xf32>
    %162 = arith.addf %159, %161 : vector<64x256xf32>
    %cst_60 = arith.constant 5.000000e-01 : f32
    %163 = vector.broadcast %cst_60 : f32 to vector<64x256xf32>
    %164 = arith.mulf %163, %162 : vector<64x256xf32>
    %165 = math.tanh %164 : vector<64x256xf32>
    %cst_61 = arith.constant 1.000000e+00 : f32
    %166 = vector.broadcast %cst_61 : f32 to vector<64x256xf32>
    %167 = arith.addf %165, %166 : vector<64x256xf32>
    %cst_62 = arith.constant 5.000000e-01 : f32
    %168 = vector.broadcast %cst_62 : f32 to vector<64x256xf32>
    %169 = arith.mulf %168, %167 : vector<64x256xf32>
    %170 = vector.extract_strided_slice %169 {offsets = [0, 0], sizes = [32, 256], strides = [1, 1]} : vector<64x256xf32> to vector<32x256xf32>
    %171 = arith.mulf %152, %170 : vector<32x256xf32>
    %172 = vector.extract_strided_slice %169 {offsets = [32, 0], sizes = [32, 256], strides = [1, 1]} : vector<64x256xf32> to vector<32x256xf32>
    %173 = arith.mulf %155, %172 : vector<32x256xf32>
    %174 = arith.addf %171, %173 : vector<32x256xf32>
    %c0_63 = arith.constant 0 : index
    %c0_64 = arith.constant 0 : index
    %175 = vector.load %arg12[%c0_63, %c0_64] : memref<32x32xbf16, #tpu.memory_space<vmem>>, vector<32x32xbf16>
    %176 = arith.truncf %174 : vector<32x256xf32> to vector<32x256xbf16>
    %cst_65 = arith.constant dense<0.000000e+00> : vector<32x256xf32>
    %177 = tpu.matmul %175, %176, %cst_65 {dimension_numbers = #tpu.dot_dimension_numbers<[1], [0], [0], [1], [0, 0, 1, 1], [], []>} : vector<32x32xbf16>, vector<32x256xbf16>, vector<32x256xf32> -> vector<32x256xf32>
    %c0_66 = arith.constant 0 : index
    %c0_67 = arith.constant 0 : index
    %178 = vector.load %arg13[%c0_66, %c0_67] : memref<32x1xf32, #tpu.memory_space<vmem>>, vector<32x1xf32>
    %179 = vector.broadcast %178 : vector<32x1xf32> to vector<32x256xf32>
    %180 = arith.addf %177, %179 : vector<32x256xf32>
    %181 = arith.addf %180, %1 : vector<32x256xf32>
    %c0_68 = arith.constant 0 : index
    %c0_69 = arith.constant 0 : index
    %c0_70 = arith.constant 0 : index
    %182 = vector.load %arg14[%c0_68, %c0_69, %c0_70] : memref<1x32x256xf32, #tpu.memory_space<vmem>>, vector<1x32x256xf32>
    %183 = vector.shape_cast %182 : vector<1x32x256xf32> to vector<32x256xf32>
    %184 = vector.shape_cast %181 : vector<32x256xf32> to vector<1x32x256xf32>
    tpu.vector_store %arg14[%c0_68, %c0_69, %c0_70], %184 {strides = array<i32>} : memref<1x32x256xf32, #tpu.memory_space<vmem>>, vector<1x32x256xf32>,
    %cst_71 = arith.constant dense<0.000000e+00> : vector<32xf32>
    %185 = vector.multi_reduction <add>, %181, %cst_71 [1] : vector<32x256xf32> to vector<32xf32>
    %186 = vector.shape_cast %185 : vector<32xf32> to vector<32x1xf32>
    %c0_72 = arith.constant 0 : index
    %c0_73 = arith.constant 0 : index
    %c0_74 = arith.constant 0 : index
    %187 = vector.load %arg15[%c0_72, %c0_73, %c0_74] : memref<1x32x1xf32, #tpu.memory_space<vmem>>, vector<1x32x1xf32>
    %188 = vector.shape_cast %187 : vector<1x32x1xf32> to vector<32x1xf32>
    %189 = vector.shape_cast %186 : vector<32x1xf32> to vector<1x32x1xf32>
    tpu.vector_store %arg15[%c0_72, %c0_73, %c0_74], %189 {strides = array<i32>} : memref<1x32x1xf32, #tpu.memory_space<vmem>>, vector<1x32x1xf32>,
    %190 = arith.mulf %181, %181 : vector<32x256xf32>
    %cst_75 = arith.constant dense<0.000000e+00> : vector<32xf32>
    %191 = vector.multi_reduction <add>, %190, %cst_75 [1] : vector<32x256xf32> to vector<32xf32>
    %192 = vector.shape_cast %191 : vector<32xf32> to vector<32x1xf32>
    %c0_76 = arith.constant 0 : index
    %c0_77 = arith.constant 0 : index
    %c0_78 = arith.constant 0 : index
    %193 = vector.load %arg16[%c0_76, %c0_77, %c0_78] : memref<1x32x1xf32, #tpu.memory_space<vmem>>, vector<1x32x1xf32>
    %194 = vector.shape_cast %193 : vector<1x32x1xf32> to vector<32x1xf32>
    %195 = vector.shape_cast %192 : vector<32x1xf32> to vector<1x32x1xf32>
    tpu.vector_store %arg16[%c0_76, %c0_77, %c0_78], %195 {strides = array<i32>} : memref<1x32x1xf32, #tpu.memory_space<vmem>>, vector<1x32x1xf32>,
    return
  }
  func.func @transform_0(%arg0: i32) -> (i32, i32, i32) {
    %c0_i32 = arith.constant 0 : i32
    %c0_i32_0 = arith.constant 0 : i32
    %c0_i32_1 = arith.constant 0 : i32
    return %arg0, %c0_i32, %c0_i32_0 : i32, i32, i32
  }
  func.func @transform_1(%arg0: i32) -> (i32, i32) {
    %c0_i32 = arith.constant 0 : i32
    %c0_i32_0 = arith.constant 0 : i32
    %c0_i32_1 = arith.constant 0 : i32
    return %c0_i32, %c0_i32_0 : i32, i32
  }
  func.func @transform_2(%arg0: i32) -> (i32, i32) {
    %c0_i32 = arith.constant 0 : i32
    %c0_i32_0 = arith.constant 0 : i32
    %c0_i32_1 = arith.constant 0 : i32
    return %c0_i32, %c0_i32_0 : i32, i32
  }
  func.func @transform_3(%arg0: i32) -> (i32, i32) {
    %c0_i32 = arith.constant 0 : i32
    %c0_i32_0 = arith.constant 0 : i32
    %c0_i32_1 = arith.constant 0 : i32
    return %c0_i32, %c0_i32_0 : i32, i32
  }
  func.func @transform_4(%arg0: i32) -> (i32, i32) {
    %c0_i32 = arith.constant 0 : i32
    %c0_i32_0 = arith.constant 0 : i32
    %c0_i32_1 = arith.constant 0 : i32
    return %c0_i32, %c0_i32_0 : i32, i32
  }
  func.func @transform_5(%arg0: i32) -> (i32, i32) {
    %c0_i32 = arith.constant 0 : i32
    %c0_i32_0 = arith.constant 0 : i32
    %c0_i32_1 = arith.constant 0 : i32
    return %c0_i32, %c0_i32_0 : i32, i32
  }
  func.func @transform_6(%arg0: i32) -> (i32, i32) {
    %c0_i32 = arith.constant 0 : i32
    %c0_i32_0 = arith.constant 0 : i32
    %c0_i32_1 = arith.constant 0 : i32
    return %c0_i32, %c0_i32_0 : i32, i32
  }
  func.func @transform_7(%arg0: i32) -> (i32, i32) {
    %c0_i32 = arith.constant 0 : i32
    %c0_i32_0 = arith.constant 0 : i32
    %c0_i32_1 = arith.constant 0 : i32
    return %c0_i32, %c0_i32_0 : i32, i32
  }
  func.func @transform_8(%arg0: i32) -> (i32, i32) {
    %c0_i32 = arith.constant 0 : i32
    %c0_i32_0 = arith.constant 0 : i32
    %c0_i32_1 = arith.constant 0 : i32
    return %c0_i32, %c0_i32_0 : i32, i32
  }
  func.func @transform_9(%arg0: i32) -> (i32, i32) {
    %c0_i32 = arith.constant 0 : i32
    %c0_i32_0 = arith.constant 0 : i32
    %c0_i32_1 = arith.constant 0 : i32
    return %c0_i32, %c0_i32_0 : i32, i32
  }
  func.func @transform_10(%arg0: i32) -> (i32, i32) {
    %c0_i32 = arith.constant 0 : i32
    %c0_i32_0 = arith.constant 0 : i32
    %c0_i32_1 = arith.constant 0 : i32
    return %c0_i32, %c0_i32_0 : i32, i32
  }
  func.func @transform_11(%arg0: i32) -> (i32, i32) {
    %c0_i32 = arith.constant 0 : i32
    %c0_i32_0 = arith.constant 0 : i32
    %c0_i32_1 = arith.constant 0 : i32
    return %c0_i32, %c0_i32_0 : i32, i32
  }
  func.func @transform_12(%arg0: i32) -> (i32, i32) {
    %c0_i32 = arith.constant 0 : i32
    %c0_i32_0 = arith.constant 0 : i32
    %c0_i32_1 = arith.constant 0 : i32
    return %c0_i32, %c0_i32_0 : i32, i32
  }
  func.func @transform_13(%arg0: i32) -> (i32, i32, i32) {
    %c0_i32 = arith.constant 0 : i32
    %c0_i32_0 = arith.constant 0 : i32
    %c0_i32_1 = arith.constant 0 : i32
    return %arg0, %c0_i32, %c0_i32_0 : i32, i32, i32
  }
  func.func @transform_14(%arg0: i32) -> (i32, i32, i32) {
    %c0_i32 = arith.constant 0 : i32
    %c0_i32_0 = arith.constant 0 : i32
    %c0_i32_1 = arith.constant 0 : i32
    return %arg0, %c0_i32, %c0_i32_0 : i32, i32, i32
  }
  func.func @transform_15(%arg0: i32) -> (i32, i32, i32) {
    %c0_i32 = arith.constant 0 : i32
    %c0_i32_0 = arith.constant 0 : i32
    %c0_i32_1 = arith.constant 0 : i32
    return %arg0, %c0_i32, %c0_i32_0 : i32, i32, i32
  }
}

module attributes {stable_mosaic.version = 11 : i64} {
  func.func @_stage2_kernel(%arg0: i32, %arg1: memref<1x32x256xf32, #tpu.memory_space<vmem>>, %arg2: memref<2x32x1xf32, #tpu.memory_space<vmem>>, %arg3: memref<2x32x1xf32, #tpu.memory_space<vmem>>, %arg4: memref<32x1xf32, #tpu.memory_space<vmem>>, %arg5: memref<32x1xf32, #tpu.memory_space<vmem>>, %arg6: memref<1x32x256xf32, #tpu.memory_space<vmem>>) attributes {dimension_semantics = [#tpu.dimension_semantics<parallel>], iteration_bounds = array<i64: 2>, scalar_prefetch = 0 : i64, scratch_operands = 0 : i64, tpu.core_type = #tpu.core_type<tc>, window_params = [{transform_indices = @transform_0, window_bounds = array<i64: 1, 32, 256>}, {pipeline_mode = #tpu.pipeline_mode<synchronous>, transform_indices = @transform_1, window_bounds = array<i64: 2, 32, 1>}, {pipeline_mode = #tpu.pipeline_mode<synchronous>, transform_indices = @transform_2, window_bounds = array<i64: 2, 32, 1>}, {pipeline_mode = #tpu.pipeline_mode<synchronous>, transform_indices = @transform_3, window_bounds = array<i64: 32, 1>}, {pipeline_mode = #tpu.pipeline_mode<synchronous>, transform_indices = @transform_4, window_bounds = array<i64: 32, 1>}, {transform_indices = @transform_5, window_bounds = array<i64: 1, 32, 256>}]} {
    %c0 = arith.constant 0 : index
    %c0_0 = arith.constant 0 : index
    %c0_1 = arith.constant 0 : index
    %0 = vector.load %arg2[%c0, %c0_0, %c0_1] : memref<2x32x1xf32, #tpu.memory_space<vmem>>, vector<1x32x1xf32>
    %1 = vector.shape_cast %0 : vector<1x32x1xf32> to vector<32x1xf32>
    %c0_2 = arith.constant 0 : index
    %c0_3 = arith.constant 0 : index
    %c0_4 = arith.constant 0 : index
    %2 = vector.load %arg3[%c0_2, %c0_3, %c0_4] : memref<2x32x1xf32, #tpu.memory_space<vmem>>, vector<1x32x1xf32>
    %3 = vector.shape_cast %2 : vector<1x32x1xf32> to vector<32x1xf32>
    %c1 = arith.constant 1 : index
    %c0_5 = arith.constant 0 : index
    %c0_6 = arith.constant 0 : index
    %4 = vector.load %arg2[%c1, %c0_5, %c0_6] : memref<2x32x1xf32, #tpu.memory_space<vmem>>, vector<1x32x1xf32>
    %5 = vector.shape_cast %4 : vector<1x32x1xf32> to vector<32x1xf32>
    %6 = arith.addf %1, %5 : vector<32x1xf32>
    %c1_7 = arith.constant 1 : index
    %c0_8 = arith.constant 0 : index
    %c0_9 = arith.constant 0 : index
    %7 = vector.load %arg3[%c1_7, %c0_8, %c0_9] : memref<2x32x1xf32, #tpu.memory_space<vmem>>, vector<1x32x1xf32>
    %8 = vector.shape_cast %7 : vector<1x32x1xf32> to vector<32x1xf32>
    %9 = arith.addf %3, %8 : vector<32x1xf32>
    %cst = arith.constant 0.001953125 : f32
    %10 = vector.broadcast %cst : f32 to vector<32x1xf32>
    %11 = arith.mulf %6, %10 : vector<32x1xf32>
    %cst_10 = arith.constant 0.001953125 : f32
    %12 = vector.broadcast %cst_10 : f32 to vector<32x1xf32>
    %13 = arith.mulf %9, %12 : vector<32x1xf32>
    %14 = arith.mulf %11, %11 : vector<32x1xf32>
    %15 = arith.subf %13, %14 : vector<32x1xf32>
    %cst_11 = arith.constant 9.99999974E-6 : f32
    %16 = vector.broadcast %cst_11 : f32 to vector<32x1xf32>
    %17 = arith.addf %15, %16 : vector<32x1xf32>
    %18 = math.rsqrt %17 : vector<32x1xf32>
    %c0_12 = arith.constant 0 : index
    %c0_13 = arith.constant 0 : index
    %19 = vector.load %arg4[%c0_12, %c0_13] : memref<32x1xf32, #tpu.memory_space<vmem>>, vector<32x1xf32>
    %20 = arith.mulf %19, %18 : vector<32x1xf32>
    %c0_14 = arith.constant 0 : index
    %c0_15 = arith.constant 0 : index
    %21 = vector.load %arg5[%c0_14, %c0_15] : memref<32x1xf32, #tpu.memory_space<vmem>>, vector<32x1xf32>
    %22 = arith.mulf %11, %20 : vector<32x1xf32>
    %23 = arith.subf %21, %22 : vector<32x1xf32>
    %c0_16 = arith.constant 0 : index
    %c0_17 = arith.constant 0 : index
    %c0_18 = arith.constant 0 : index
    %24 = vector.load %arg1[%c0_16, %c0_17, %c0_18] : memref<1x32x256xf32, #tpu.memory_space<vmem>>, vector<1x32x256xf32>
    %25 = vector.shape_cast %24 : vector<1x32x256xf32> to vector<32x256xf32>
    %26 = vector.broadcast %20 : vector<32x1xf32> to vector<32x256xf32>
    %27 = arith.mulf %25, %26 : vector<32x256xf32>
    %28 = vector.broadcast %23 : vector<32x1xf32> to vector<32x256xf32>
    %29 = arith.addf %27, %28 : vector<32x256xf32>
    %c0_19 = arith.constant 0 : index
    %c0_20 = arith.constant 0 : index
    %c0_21 = arith.constant 0 : index
    %30 = vector.load %arg6[%c0_19, %c0_20, %c0_21] : memref<1x32x256xf32, #tpu.memory_space<vmem>>, vector<1x32x256xf32>
    %31 = vector.shape_cast %30 : vector<1x32x256xf32> to vector<32x256xf32>
    %32 = vector.shape_cast %29 : vector<32x256xf32> to vector<1x32x256xf32>
    tpu.vector_store %arg6[%c0_19, %c0_20, %c0_21], %32 {strides = array<i32>} : memref<1x32x256xf32, #tpu.memory_space<vmem>>, vector<1x32x256xf32>,
    return
  }
  func.func @transform_0(%arg0: i32) -> (i32, i32, i32) {
    %c0_i32 = arith.constant 0 : i32
    %c0_i32_0 = arith.constant 0 : i32
    %c0_i32_1 = arith.constant 0 : i32
    return %arg0, %c0_i32, %c0_i32_0 : i32, i32, i32
  }
  func.func @transform_1(%arg0: i32) -> (i32, i32, i32) {
    %c0_i32 = arith.constant 0 : i32
    %c0_i32_0 = arith.constant 0 : i32
    %c0_i32_1 = arith.constant 0 : i32
    %c0_i32_2 = arith.constant 0 : i32
    return %c0_i32, %c0_i32_0, %c0_i32_1 : i32, i32, i32
  }
  func.func @transform_2(%arg0: i32) -> (i32, i32, i32) {
    %c0_i32 = arith.constant 0 : i32
    %c0_i32_0 = arith.constant 0 : i32
    %c0_i32_1 = arith.constant 0 : i32
    %c0_i32_2 = arith.constant 0 : i32
    return %c0_i32, %c0_i32_0, %c0_i32_1 : i32, i32, i32
  }
  func.func @transform_3(%arg0: i32) -> (i32, i32) {
    %c0_i32 = arith.constant 0 : i32
    %c0_i32_0 = arith.constant 0 : i32
    %c0_i32_1 = arith.constant 0 : i32
    return %c0_i32, %c0_i32_0 : i32, i32
  }
  func.func @transform_4(%arg0: i32) -> (i32, i32) {
    %c0_i32 = arith.constant 0 : i32
    %c0_i32_0 = arith.constant 0 : i32
    %c0_i32_1 = arith.constant 0 : i32
    return %c0_i32, %c0_i32_0 : i32, i32
  }
  func.func @transform_5(%arg0: i32) -> (i32, i32, i32) {
    %c0_i32 = arith.constant 0 : i32
    %c0_i32_0 = arith.constant 0 : i32
    %c0_i32_1 = arith.constant 0 : i32
    return %arg0, %c0_i32, %c0_i32_0 : i32, i32, i32
  }
}

</mosaic_0001>

<llo_original>
// kernel: mh_mamba_block.3
$region0: #{mh_mamba_block.3}
  #allocation0 [shape = 'u32[]', space=smem, size = 0x4, offset = 0x4, fixed_abs, tag = 'smem constant byte address 0x4 - core index']
  #allocation1 [shape = 'u32[72,128]{1,0:T(1,128)}', space=vmem, size = 0x9000, scoped, tag = 'internal scratch']
  %s0 = inlined_call_operand.vmem [shape: f32[2,32,256], index: 0, kind: input, shape index: {}]
  %s1 = inlined_call_operand.vmem [shape: f32[2,32,1], index: 1, kind: input, shape index: {}]
  %s2 = inlined_call_operand.vmem [shape: f32[2,32,1], index: 2, kind: input, shape index: {}]
  %s3 = inlined_call_operand.vmem [shape: f32[32,1], index: 3, kind: input, shape index: {}]
  %s4 = inlined_call_operand.vmem [shape: f32[32,1], index: 4, kind: input, shape index: {}]
  %s5 = inlined_call_operand.vmem [shape: f32[2,32,256], index: 5, kind: output, shape index: {}]
  %s6 = sld [smem:[#allocation0]]
  $region53: #{mh_mamba_block.3} parent=0
    _
  %s8 = ssub.s32 1, %s6
  %s9 = scalar_select 0, %s8, %s6
  loop: start=0, step=1, limit=4
  $region2: #{mh_mamba_block.3} parent=0 // loop_pre_header
    _
  $region3: #{mh_mamba_block.3} parent=0 // loop_header
    %s11 = sphi 0, %s15
    %p12 = scmp.ge.s32.totalorder %s11, 4
    %s21 = sphi 0, %s23
    %s24 = sphi 0, %s21
    %s25 = sphi 0, %s24
    %s41 = sphi 0, %s25
    %s45 = sphi 0, %s45
    %s47 = sphi 0, %s45
    %s48 = sphi 0, %s47
    %s62 = sphi 0, %s48
    %s66 = sphi 0, %s66
    %s68 = sphi 0, %s66
    %s69 = sphi 0, %s68
    %s83 = sphi 0, %s69
    %s87 = sphi 0, %s87
    %s89 = sphi 0, %s87
    %s90 = sphi 0, %s89
    %s104 = sphi 0, %s90
    %s108 = sphi 0, %s108
    %s110 = sphi 0, %s108
    %s111 = sphi 0, %s110
    %s125 = sphi 0, %s111
    %s131 = sphi 0, %s133
    %s134 = sphi 0, %s131
    %s135 = sphi 0, %s134
    %s151 = sphi 0, %s135
  $region4: #{mh_mamba_block.3} parent=0 // loop_header_branch
    %14 = sbr.rel (%p12) target = $region8
  $region5: #{mh_mamba_block.3} parent=0 // loop_body
    %s16 = ssub.s32 %s11, 1
    %s17 = ssub.s32 %s11, 2
    %s18 = sadd.s32 %s11, 1
    %s19 = ssub.s32 %s11, %s18
    %p20 = scmp.eq.s32.totalorder %s19, 0
    %s22 = sadd.s32 %s21, 1
    %s23 = scalar_select %p20, %s21, %s22
    %p26 = pneg %p20
    %p27 = scmp.eq.s32.totalorder %s11, 1
    %p28 = por %p26, %p27
    %p29 = scmp.ne.s32.totalorder %s21, %s24
    %p30 = scmp.eq.s32.totalorder %s11, 0
    %p31 = por %p29, %p30
    %p32 = scmp.ne.s32.totalorder %s21, %s24
    %p33 = scmp.eq.s32.totalorder %s16, 1
    %p34 = por %p32, %p33
    %p35 = scmp.ne.s32.totalorder %s24, %s25
    %p36 = scmp.eq.s32.totalorder %s16, 0
    %p37 = por %p35, %p36
    %p38 = scmp.ne.s32.totalorder %s24, %s25
    %p39 = scmp.eq.s32.totalorder %s17, 1
    %p40 = por %p38, %p39
    %p42 = scmp.ne.s32.totalorder %s25, %s41
    %p43 = scmp.eq.s32.totalorder %s17, 0
    %p44 = por %p42, %p43
    %s46 = sadd.s32 %s45, 1
    %p49 = scmp.eq.s32.totalorder %s11, 1
    %p50 = scmp.ne.s32.totalorder %s45, %s47
    %p51 = scmp.eq.s32.totalorder %s11, 0
    %p52 = por %p50, %p51
    %p53 = scmp.ne.s32.totalorder %s45, %s47
    %p54 = scmp.eq.s32.totalorder %s16, 1
    %p55 = por %p53, %p54
    %p56 = scmp.ne.s32.totalorder %s47, %s48
    %p57 = scmp.eq.s32.totalorder %s16, 0
    %p58 = por %p56, %p57
    %p59 = scmp.ne.s32.totalorder %s47, %s48
    %p60 = scmp.eq.s32.totalorder %s17, 1
    %p61 = por %p59, %p60
    %p63 = scmp.ne.s32.totalorder %s48, %s62
    %p64 = scmp.eq.s32.totalorder %s17, 0
    %p65 = por %p63, %p64
    %s67 = sadd.s32 %s66, 1
    %p70 = scmp.eq.s32.totalorder %s11, 1
    %p71 = scmp.ne.s32.totalorder %s66, %s68
    %p72 = scmp.eq.s32.totalorder %s11, 0
    %p73 = por %p71, %p72
    %p74 = scmp.ne.s32.totalorder %s66, %s68
    %p75 = scmp.eq.s32.totalorder %s16, 1
    %p76 = por %p74, %p75
    %p77 = scmp.ne.s32.totalorder %s68, %s69
    %p78 = scmp.eq.s32.totalorder %s16, 0
    %p79 = por %p77, %p78
    %p80 = scmp.ne.s32.totalorder %s68, %s69
    %p81 = scmp.eq.s32.totalorder %s17, 1
    %p82 = por %p80, %p81
    %p84 = scmp.ne.s32.totalorder %s69, %s83
    %p85 = scmp.eq.s32.totalorder %s17, 0
    %p86 = por %p84, %p85
    %s88 = sadd.s32 %s87, 1
    %p91 = scmp.eq.s32.totalorder %s11, 1
    %p92 = scmp.ne.s32.totalorder %s87, %s89
    %p93 = scmp.eq.s32.totalorder %s11, 0
    %p94 = por %p92, %p93
    %p95 = scmp.ne.s32.totalorder %s87, %s89
    %p96 = scmp.eq.s32.totalorder %s16, 1
    %p97 = por %p95, %p96
    %p98 = scmp.ne.s32.totalorder %s89, %s90
    %p99 = scmp.eq.s32.totalorder %s16, 0
    %p100 = por %p98, %p99
    %p101 = scmp.ne.s32.totalorder %s89, %s90
    %p102 = scmp.eq.s32.totalorder %s17, 1
    %p103 = por %p101, %p102
    %p105 = scmp.ne.s32.totalorder %s90, %s104
    %p106 = scmp.eq.s32.totalorder %s17, 0
    %p107 = por %p105, %p106
    %s109 = sadd.s32 %s108, 1
    %p112 = scmp.eq.s32.totalorder %s11, 1
    %p113 = scmp.ne.s32.totalorder %s108, %s110
    %p114 = scmp.eq.s32.totalorder %s11, 0
    %p115 = por %p113, %p114
    %p116 = scmp.ne.s32.totalorder %s108, %s110
    %p117 = scmp.eq.s32.totalorder %s16, 1
    %p118 = por %p116, %p117
    %p119 = scmp.ne.s32.totalorder %s110, %s111
    %p120 = scmp.eq.s32.totalorder %s16, 0
    %p121 = por %p119, %p120
    %p122 = scmp.ne.s32.totalorder %s110, %s111
    %p123 = scmp.eq.s32.totalorder %s17, 1
    %p124 = por %p122, %p123
    %p126 = scmp.ne.s32.totalorder %s111, %s125
    %p127 = scmp.eq.s32.totalorder %s17, 0
    %p128 = por %p126, %p127
    %s129 = ssub.s32 %s11, %s18
    %p130 = scmp.eq.s32.totalorder %s129, 0
    %s132 = sadd.s32 %s131, 1
    %s133 = scalar_select %p130, %s131, %s132
    %p136 = pneg %p130
    %p137 = scmp.eq.s32.totalorder %s11, 1
    %p138 = por %p136, %p137
    %p139 = scmp.ne.s32.totalorder %s131, %s134
    %p140 = scmp.eq.s32.totalorder %s11, 0
    %p141 = por %p139, %p140
    %p142 = scmp.ne.s32.totalorder %s131, %s134
    %p143 = scmp.eq.s32.totalorder %s16, 1
    %p144 = por %p142, %p143
    %p145 = scmp.ne.s32.totalorder %s134, %s135
    %p146 = scmp.eq.s32.totalorder %s16, 0
    %p147 = por %p145, %p146
    %p148 = scmp.ne.s32.totalorder %s134, %s135
    %p149 = scmp.eq.s32.totalorder %s17, 1
    %p150 = por %p148, %p149
    %p152 = scmp.ne.s32.totalorder %s135, %s151
    %p153 = scmp.eq.s32.totalorder %s17, 0
    %p154 = por %p152, %p153
    %p155 = scmp.le.s32.totalorder 1, %s11
    %p156 = scmp.lt.s32.totalorder %s11, 3
    %p157 = pnand %p155, %p156
    %p158 = pneg %p157
    // Predicated region
    $region9: #{mh_mamba_block.3} parent=5 // pred_check
      _
    $region10: #{mh_mamba_block.3} parent=5 // pred_check_branch
      %160 = sbr.rel (%p157) target = $region12
    $region11: #{mh_mamba_block.3} parent=5 // pred_region
      %s161 = ssub.s32 %s11, 1
      // Predicated region
      $region13: #{mh_mamba_block.3} parent=11 // pred_check
        %p162 = pneg %p58
      $region14: #{mh_mamba_block.3} parent=11 // pred_check_branch
        %164 = sbr.rel (%p162) target = $region16
      $region15: #{mh_mamba_block.3} parent=11 // pred_region
        _
      $region16: #{mh_mamba_block.3} parent=11 // pred_fallthru
        _
      // Predicated region
      $region17: #{mh_mamba_block.3} parent=11 // pred_check
        %p165 = pneg %p79
      $region18: #{mh_mamba_block.3} parent=11 // pred_check_branch
        %167 = sbr.rel (%p165) target = $region20
      $region19: #{mh_mamba_block.3} parent=11 // pred_region
        _
      $region20: #{mh_mamba_block.3} parent=11 // pred_fallthru
        _
      // Predicated region
      $region21: #{mh_mamba_block.3} parent=11 // pred_check
        %p168 = pneg %p100
      $region22: #{mh_mamba_block.3} parent=11 // pred_check_branch
        %170 = sbr.rel (%p168) target = $region24
      $region23: #{mh_mamba_block.3} parent=11 // pred_region
        _
      $region24: #{mh_mamba_block.3} parent=11 // pred_fallthru
        _
      // Predicated region
      $region25: #{mh_mamba_block.3} parent=11 // pred_check
        %p171 = pneg %p121
      $region26: #{mh_mamba_block.3} parent=11 // pred_check_branch
        %173 = sbr.rel (%p171) target = $region28
      $region27: #{mh_mamba_block.3} parent=11 // pred_region
        _
      $region28: #{mh_mamba_block.3} parent=11 // pred_fallthru
        _
    $region12: #{mh_mamba_block.3} parent=5 // pred_fallthru
      _
    %p174 = scmp.lt.s32.totalorder %s11, 2
    // Predicated region
    $region29: #{mh_mamba_block.3} parent=5 // pred_check
      %p175 = pneg %p174
    $region30: #{mh_mamba_block.3} parent=5 // pred_check_branch
      %177 = sbr.rel (%p175) target = $region32
    $region31: #{mh_mamba_block.3} parent=5 // pred_region
      // Predicated region
      $region33: #{mh_mamba_block.3} parent=31 // pred_check
        %p178 = pneg %p31
      $region34: #{mh_mamba_block.3} parent=31 // pred_check_branch
        %180 = sbr.rel (%p178) target = $region36
      $region35: #{mh_mamba_block.3} parent=31 // pred_region
        %p181 = scmp.lt.s32.totalorder %s11, 1
        %s182 = scalar_select %p181, %s11, 1
        %s183 = smul.addr %s182, 8
        %s184 = smul.addr %s183, 8
        %s185 = scalar_lea.vmem %s0, %s184
      $region36: #{mh_mamba_block.3} parent=31 // pred_fallthru
        _
    $region32: #{mh_mamba_block.3} parent=5 // pred_fallthru
      _
    %p186 = scmp.le.s32.totalorder 1, %s11
    %p187 = scmp.lt.s32.totalorder %s11, 3
    %p188 = pnand %p186, %p187
    %p189 = pneg %p188
    // Predicated region
    $region37: #{mh_mamba_block.3} parent=5 // pred_check
      _
    $region38: #{mh_mamba_block.3} parent=5 // pred_check_branch
      %191 = sbr.rel (%p188) target = $region40
    $region39: #{mh_mamba_block.3} parent=5 // pred_region
      %s192 = ssub.s32 %s11, 1
      %p193 = scmp.lt.s32.totalorder %s16, 1
      %s194 = scalar_select %p193, %s16, 1
      %s195 = smul.addr %s194, 8
      %s196 = smul.addr %s195, 8
      %s197 = scalar_lea.vmem %s0, %s196
      %p198 = pneg %p37
      %p199 = pneg %p34
      %p200 = pneg %p58
      %p201 = pneg %p55
      %p202 = pneg %p79
      %p203 = pneg %p76
      %p204 = pneg %p100
      %p205 = pneg %p97
      %p206 = pneg %p121
      %p207 = pneg %p118
      %p208 = pneg %p147
      %p209 = pneg %p144
      %p210 = scmp.lt.s32.totalorder %s16, 1
      %s211 = scalar_select %p210, %s16, 1
      %s212 = smul.addr %s211, 8
      %s213 = smul.addr %s212, 8
      %s214 = scalar_lea.vmem %s5, %s213
      %p215 = scmp.lt.s32.totalorder %s16, 1
      %s216 = scalar_select %p215, %s16, 1
      %s217 = smul.addr %s216, 8
      %s218 = smul.addr %s217, 8
      %s219 = scalar_lea.vmem %s0, %s218
      %p220 = scmp.lt.s32.totalorder %s16, 1
      %s221 = scalar_select %p220, %s16, 1
      %s222 = smul.addr %s221, 8
      %s223 = smul.addr %s222, 8
      %s224 = scalar_lea.vmem %s5, %s223
      %v225 = vld [vmem:[%s1] sm:$0xff]
      %v226 = vld [vmem:[%s1 + $0x8] sm:$0xff]
      %v227 = vld [vmem:[%s1 + $0x10] sm:$0xff]
      %v228 = vld [vmem:[%s1 + $0x18] sm:$0xff]
      %v229 = vld [vmem:[%s2] sm:$0xff]
      %v230 = vld [vmem:[%s2 + $0x8] sm:$0xff]
      %v231 = vld [vmem:[%s2 + $0x10] sm:$0xff]
      %v232 = vld [vmem:[%s2 + $0x18] sm:$0xff]
      %s233 = scalar_lea.vmem %s1, 32
      %v234 = vld [vmem:[%s233] sm:$0xff]
      %v235 = vld [vmem:[%s233 + $0x8] sm:$0xff]
      %v236 = vld [vmem:[%s233 + $0x10] sm:$0xff]
      %v237 = vld [vmem:[%s233 + $0x18] sm:$0xff]
      %v238 = vadd.f32 %v225, %v234
      %v239 = vadd.f32 %v226, %v235
      %v240 = vadd.f32 %v227, %v236
      %v241 = vadd.f32 %v228, %v237
      %s242 = scalar_lea.vmem %s2, 32
      %v243 = vld [vmem:[%s242] sm:$0xff]
      %v244 = vld [vmem:[%s242 + $0x8] sm:$0xff]
      %v245 = vld [vmem:[%s242 + $0x10] sm:$0xff]
      %v246 = vld [vmem:[%s242 + $0x18] sm:$0xff]
      %v247 = vadd.f32 %v229, %v243
      %v248 = vadd.f32 %v230, %v244
      %v249 = vadd.f32 %v231, %v245
      %v250 = vadd.f32 %v232, %v246
      %v251 = vmul.f32 %v238, 0.001953125
      %v252 = vmul.f32 %v239, 0.001953125
      %v253 = vmul.f32 %v240, 0.001953125
      %v254 = vmul.f32 %v241, 0.001953125
      %v255 = vmul.f32 %v247, 0.001953125
      %v256 = vmul.f32 %v248, 0.001953125
      %v257 = vmul.f32 %v249, 0.001953125
      %v258 = vmul.f32 %v250, 0.001953125
      %v259 = vmul.f32 %v251, %v251
      %v260 = vmul.f32 %v252, %v252
      %v261 = vmul.f32 %v253, %v253
      %v262 = vmul.f32 %v254, %v254
      %v263 = vsub.f32 %v255, %v259
      %v264 = vsub.f32 %v256, %v260
      %v265 = vsub.f32 %v257, %v261
      %v266 = vsub.f32 %v258, %v262
      %v267 = vadd.f32 %v263, 1e-05
      %v268 = vadd.f32 %v264, 1e-05
      %v269 = vadd.f32 %v265, 1e-05
      %v270 = vadd.f32 %v266, 1e-05
      %v271 = vrsqrt.pop %v267
      %v272 = vmul.f32 %v271, %v267
      %v273 = vmul.f32 %v272, %v271
      %v274 = vmul.f32 0.5, %v273
      %v275 = vsub.f32 1.5, %v274
      %v276 = vmul.f32 %v271, %v275
      %vm277 = vweird.f32 %v267
      %vm278 = vweird.f32 %v271
      %vm279 = vmor %vm277, %vm278
      %v280 = vsel %vm279, %v271, %v276
      %v281 = vrsqrt.pop %v268
      %v282 = vmul.f32 %v281, %v268
      %v283 = vmul.f32 %v282, %v281
      %v284 = vmul.f32 0.5, %v283
      %v285 = vsub.f32 1.5, %v284
      %v286 = vmul.f32 %v281, %v285
      %vm287 = vweird.f32 %v268
      %vm288 = vweird.f32 %v281
      %vm289 = vmor %vm287, %vm288
      %v290 = vsel %vm289, %v281, %v286
      %v291 = vrsqrt.pop %v269
      %v292 = vmul.f32 %v291, %v269
      %v293 = vmul.f32 %v292, %v291
      %v294 = vmul.f32 0.5, %v293
      %v295 = vsub.f32 1.5, %v294
      %v296 = vmul.f32 %v291, %v295
      %vm297 = vweird.f32 %v269
      %vm298 = vweird.f32 %v291
      %vm299 = vmor %vm297, %vm298
      %v300 = vsel %vm299, %v291, %v296
      %v301 = vrsqrt.pop %v270
      %v302 = vmul.f32 %v301, %v270
      %v303 = vmul.f32 %v302, %v301
      %v304 = vmul.f32 0.5, %v303
      %v305 = vsub.f32 1.5, %v304
      %v306 = vmul.f32 %v301, %v305
      %vm307 = vweird.f32 %v270
      %vm308 = vweird.f32 %v301
      %vm309 = vmor %vm307, %vm308
      %v310 = vsel %vm309, %v301, %v306
      %v311 = vld [vmem:[%s3] sm:$0xff]
      %v312 = vld [vmem:[%s3 + $0x8] sm:$0xff]
      %v313 = vld [vmem:[%s3 + $0x10] sm:$0xff]
      %v314 = vld [vmem:[%s3 + $0x18] sm:$0xff]
      %v315 = vmul.f32 %v311, %v280
      %v316 = vmul.f32 %v312, %v290
      %v317 = vmul.f32 %v313, %v300
      %v318 = vmul.f32 %v314, %v310
      %v319 = vld [vmem:[%s4] sm:$0xff]
      %v320 = vld [vmem:[%s4 + $0x8] sm:$0xff]
      %v321 = vld [vmem:[%s4 + $0x10] sm:$0xff]
      %v322 = vld [vmem:[%s4 + $0x18] sm:$0xff]
      %v323 = vmul.f32 %v251, %v315
      %v324 = vmul.f32 %v252, %v316
      %v325 = vmul.f32 %v253, %v317
      %v326 = vmul.f32 %v254, %v318
      %v327 = vsub.f32 %v319, %v323
      %v328 = vsub.f32 %v320, %v324
      %v329 = vsub.f32 %v321, %v325
      %v330 = vsub.f32 %v322, %v326
      %v331 = vld [vmem:[%s219] sm:$0xff]
      %v332 = vld [vmem:[%s219 + $0x8] sm:$0xff]
      %v333 = vld [vmem:[%s219 + $0x10] sm:$0xff]
      %v334 = vld [vmem:[%s219 + $0x18] sm:$0xff]
      %v335 = vld [vmem:[%s219 + $0x20] sm:$0xff]
      %v336 = vld [vmem:[%s219 + $0x28] sm:$0xff]
      %v337 = vld [vmem:[%s219 + $0x30] sm:$0xff]
      %v338 = vld [vmem:[%s219 + $0x38] sm:$0xff]
      %340 = vset.pattern.permute.xlu0 0
      %341 = vperm.xlu0 %340, %v315
      %v342 = vpop.permute.xlu0 %341
      %345 = vset.pattern.permute.xlu0 0
      %346 = vperm.xlu0 %345, %v316
      %v347 = vpop.permute.xlu0 %346
      %350 = vset.pattern.permute.xlu0 0
      %351 = vperm.xlu0 %350, %v317
      %v352 = vpop.permute.xlu0 %351
      %355 = vset.pattern.permute.xlu0 0
      %356 = vperm.xlu0 %355, %v318
      %v357 = vpop.permute.xlu0 %356
      %v359 = vmul.f32 %v331, %v342
      %v360 = vmul.f32 %v332, %v342
      %v361 = vmul.f32 %v333, %v347
      %v362 = vmul.f32 %v334, %v347
      %v363 = vmul.f32 %v335, %v352
      %v364 = vmul.f32 %v336, %v352
      %v365 = vmul.f32 %v337, %v357
      %v366 = vmul.f32 %v338, %v357
      %368 = vset.pattern.permute.xlu0 0
      %369 = vperm.xlu0 %368, %v327
      %v370 = vpop.permute.xlu0 %369
      %373 = vset.pattern.permute.xlu0 0
      %374 = vperm.xlu0 %373, %v328
      %v375 = vpop.permute.xlu0 %374
      %378 = vset.pattern.permute.xlu0 0
      %379 = vperm.xlu0 %378, %v329
      %v380 = vpop.permute.xlu0 %379
      %383 = vset.pattern.permute.xlu0 0
      %384 = vperm.xlu0 %383, %v330
      %v385 = vpop.permute.xlu0 %384
      %v387 = vadd.f32 %v359, %v370
      %v388 = vadd.f32 %v360, %v370
      %v389 = vadd.f32 %v361, %v375
      %v390 = vadd.f32 %v362, %v375
      %v391 = vadd.f32 %v363, %v380
      %v392 = vadd.f32 %v364, %v380
      %v393 = vadd.f32 %v365, %v385
      %v394 = vadd.f32 %v366, %v385
      %395 = vst [vmem:[%s224] sm:$0xff] %v387
      %396 = vst [vmem:[%s224 + $0x8] sm:$0xff] %v388
      %397 = vst [vmem:[%s224 + $0x10] sm:$0xff] %v389
      %398 = vst [vmem:[%s224 + $0x18] sm:$0xff] %v390
      %399 = vst [vmem:[%s224 + $0x20] sm:$0xff] %v391
      %400 = vst [vmem:[%s224 + $0x28] sm:$0xff] %v392
      %401 = vst [vmem:[%s224 + $0x30] sm:$0xff] %v393
      %402 = vst [vmem:[%s224 + $0x38] sm:$0xff] %v394
      %p403 = scmp.lt.s32.totalorder %s16, 1
      %s404 = scalar_select %p403, %s16, 1
      %s405 = smul.addr %s404, 8
      %s406 = smul.addr %s405, 8
      %s407 = scalar_lea.vmem %s5, %s406
      // Predicated region
      $region41: #{mh_mamba_block.3} parent=39 // pred_check
        %p408 = pneg %p144
      $region42: #{mh_mamba_block.3} parent=39 // pred_check_branch
        %410 = sbr.rel (%p408) target = $region44
      $region43: #{mh_mamba_block.3} parent=39 // pred_region
        _
      $region44: #{mh_mamba_block.3} parent=39 // pred_fallthru
        _
    $region40: #{mh_mamba_block.3} parent=5 // pred_fallthru
      _
    %p411 = scmp.le.s32.totalorder 2, %s11
    // Predicated region
    $region45: #{mh_mamba_block.3} parent=5 // pred_check
      %p412 = pneg %p411
    $region46: #{mh_mamba_block.3} parent=5 // pred_check_branch
      %414 = sbr.rel (%p412) target = $region48
    $region47: #{mh_mamba_block.3} parent=5 // pred_region
      %s415 = ssub.s32 %s11, 2
      // Predicated region
      $region49: #{mh_mamba_block.3} parent=47 // pred_check
        %p416 = pneg %p150
      $region50: #{mh_mamba_block.3} parent=47 // pred_check_branch
        %418 = sbr.rel (%p416) target = $region52
      $region51: #{mh_mamba_block.3} parent=47 // pred_region
        %p419 = scmp.lt.s32.totalorder %s17, 1
        %s420 = scalar_select %p419, %s17, 1
        %s421 = smul.addr %s420, 8
        %s422 = smul.addr %s421, 8
        %s423 = scalar_lea.vmem %s5, %s422
      $region52: #{mh_mamba_block.3} parent=47 // pred_fallthru
        _
    $region48: #{mh_mamba_block.3} parent=5 // pred_fallthru
      _
  $region6: #{mh_mamba_block.3} parent=0 // loop_footer
    %s15 = sadd.s32 1, %s11
  $region7: #{mh_mamba_block.3} parent=0 // loop_footer_branch
    %10 = sbr.rel target = $region3
  $region8: #{mh_mamba_block.3} parent=0 // loop_exit
    _

// kernel: mh_mamba_block.2
$region0: #{mh_mamba_block.2}
  #allocation0 [shape = 'u32[]', space=smem, size = 0x4, offset = 0x4, fixed_abs, tag = 'smem constant byte address 0x4 - core index']
  #allocation1 [shape = 'u32[72,128]{1,0:T(1,128)}', space=vmem, size = 0x9000, scoped, tag = 'internal scratch']
  %s0 = inlined_call_operand.vmem [shape: f32[2,32,256], index: 0, kind: input, shape index: {}]
  %s1 = inlined_call_operand.vmem [shape: s32[1,256], index: 1, kind: input, shape index: {}]
  %s2 = inlined_call_operand.vmem [shape: s32[1,256], index: 2, kind: input, shape index: {}]
  %s3 = inlined_call_operand.vmem [shape: bf16[32,32], index: 3, kind: input, shape index: {}]
  %s4 = inlined_call_operand.vmem [shape: f32[32,1], index: 4, kind: input, shape index: {}]
  %s5 = inlined_call_operand.vmem [shape: f32[32,5], index: 5, kind: input, shape index: {}]
  %s6 = inlined_call_operand.vmem [shape: f32[32,1], index: 6, kind: input, shape index: {}]
  %s7 = inlined_call_operand.vmem [shape: f32[32,5], index: 7, kind: input, shape index: {}]
  %s8 = inlined_call_operand.vmem [shape: f32[32,1], index: 8, kind: input, shape index: {}]
  %s9 = inlined_call_operand.vmem [shape: bf16[64,64], index: 9, kind: input, shape index: {}]
  %s10 = inlined_call_operand.vmem [shape: f32[64,1], index: 10, kind: input, shape index: {}]
  %s11 = inlined_call_operand.vmem [shape: bf16[32,32], index: 11, kind: input, shape index: {}]
  %s12 = inlined_call_operand.vmem [shape: f32[32,1], index: 12, kind: input, shape index: {}]
  %s13 = inlined_call_operand.vmem [shape: f32[2,32,256], index: 13, kind: output, shape index: {0}]
  %s14 = inlined_call_operand.vmem [shape: f32[2,32,1], index: 14, kind: output, shape index: {1}]
  %s15 = inlined_call_operand.vmem [shape: f32[2,32,1], index: 15, kind: output, shape index: {2}]
  %16 = xla_tuple %s13, %s14, %s15
  %s17 = sld [smem:[#allocation0]]
  $region101: #{mh_mamba_block.2} parent=0
    _
  %s19 = ssub.s32 1, %s17
  %s20 = scalar_select 0, %s19, %s17
  loop: start=0, step=1, limit=4
  $region2: #{mh_mamba_block.2} parent=0 // loop_pre_header
    _
  $region3: #{mh_mamba_block.2} parent=0 // loop_header
    %s22 = sphi 0, %s26
    %p23 = scmp.ge.s32.totalorder %s22, 4
    %s32 = sphi 0, %s34
    %s35 = sphi 0, %s32
    %s36 = sphi 0, %s35
    %s52 = sphi 0, %s36
    %s56 = sphi 0, %s56
    %s58 = sphi 0, %s56
    %s59 = sphi 0, %s58
    %s73 = sphi 0, %s59
    %s77 = sphi 0, %s77
    %s79 = sphi 0, %s77
    %s80 = sphi 0, %s79
    %s94 = sphi 0, %s80
    %s98 = sphi 0, %s98
    %s100 = sphi 0, %s98
    %s101 = sphi 0, %s100
    %s115 = sphi 0, %s101
    %s119 = sphi 0, %s119
    %s121 = sphi 0, %s119
    %s122 = sphi 0, %s121
    %s136 = sphi 0, %s122
    %s140 = sphi 0, %s140
    %s142 = sphi 0, %s140
    %s143 = sphi 0, %s142
    %s157 = sphi 0, %s143
    %s161 = sphi 0, %s161
    %s163 = sphi 0, %s161
    %s164 = sphi 0, %s163
    %s178 = sphi 0, %s164
    %s182 = sphi 0, %s182
    %s184 = sphi 0, %s182
    %s185 = sphi 0, %s184
    %s199 = sphi 0, %s185
    %s203 = sphi 0, %s203
    %s205 = sphi 0, %s203
    %s206 = sphi 0, %s205
    %s220 = sphi 0, %s206
    %s224 = sphi 0, %s224
    %s226 = sphi 0, %s224
    %s227 = sphi 0, %s226
    %s241 = sphi 0, %s227
    %s245 = sphi 0, %s245
    %s247 = sphi 0, %s245
    %s248 = sphi 0, %s247
    %s262 = sphi 0, %s248
    %s266 = sphi 0, %s266
    %s268 = sphi 0, %s266
    %s269 = sphi 0, %s268
    %s283 = sphi 0, %s269
    %s287 = sphi 0, %s287
    %s289 = sphi 0, %s287
    %s290 = sphi 0, %s289
    %s304 = sphi 0, %s290
    %s310 = sphi 0, %s312
    %s313 = sphi 0, %s310
    %s314 = sphi 0, %s313
    %s330 = sphi 0, %s314
    %s336 = sphi 0, %s338
    %s339 = sphi 0, %s336
    %s340 = sphi 0, %s339
    %s356 = sphi 0, %s340
    %s362 = sphi 0, %s364
    %s365 = sphi 0, %s362
    %s366 = sphi 0, %s365
    %s382 = sphi 0, %s366
  $region4: #{mh_mamba_block.2} parent=0 // loop_header_branch
    %25 = sbr.rel (%p23) target = $region8
  $region5: #{mh_mamba_block.2} parent=0 // loop_body
    %s27 = ssub.s32 %s22, 1
    %s28 = ssub.s32 %s22, 2
    %s29 = sadd.s32 %s22, 1
    %s30 = ssub.s32 %s22, %s29
    %p31 = scmp.eq.s32.totalorder %s30, 0
    %s33 = sadd.s32 %s32, 1
    %s34 = scalar_select %p31, %s32, %s33
    %p37 = pneg %p31
    %p38 = scmp.eq.s32.totalorder %s22, 1
    %p39 = por %p37, %p38
    %p40 = scmp.ne.s32.totalorder %s32, %s35
    %p41 = scmp.eq.s32.totalorder %s22, 0
    %p42 = por %p40, %p41
    %p43 = scmp.ne.s32.totalorder %s32, %s35
    %p44 = scmp.eq.s32.totalorder %s27, 1
    %p45 = por %p43, %p44
    %p46 = scmp.ne.s32.totalorder %s35, %s36
    %p47 = scmp.eq.s32.totalorder %s27, 0
    %p48 = por %p46, %p47
    %p49 = scmp.ne.s32.totalorder %s35, %s36
    %p50 = scmp.eq.s32.totalorder %s28, 1
    %p51 = por %p49, %p50
    %p53 = scmp.ne.s32.totalorder %s36, %s52
    %p54 = scmp.eq.s32.totalorder %s28, 0
    %p55 = por %p53, %p54
    %s57 = sadd.s32 %s56, 1
    %p60 = scmp.eq.s32.totalorder %s22, 1
    %p61 = scmp.ne.s32.totalorder %s56, %s58
    %p62 = scmp.eq.s32.totalorder %s22, 0
    %p63 = por %p61, %p62
    %p64 = scmp.ne.s32.totalorder %s56, %s58
    %p65 = scmp.eq.s32.totalorder %s27, 1
    %p66 = por %p64, %p65
    %p67 = scmp.ne.s32.totalorder %s58, %s59
    %p68 = scmp.eq.s32.totalorder %s27, 0
    %p69 = por %p67, %p68
    %p70 = scmp.ne.s32.totalorder %s58, %s59
    %p71 = scmp.eq.s32.totalorder %s28, 1
    %p72 = por %p70, %p71
    %p74 = scmp.ne.s32.totalorder %s59, %s73
    %p75 = scmp.eq.s32.totalorder %s28, 0
    %p76 = por %p74, %p75
    %s78 = sadd.s32 %s77, 1
    %p81 = scmp.eq.s32.totalorder %s22, 1
    %p82 = scmp.ne.s32.totalorder %s77, %s79
    %p83 = scmp.eq.s32.totalorder %s22, 0
    %p84 = por %p82, %p83
    %p85 = scmp.ne.s32.totalorder %s77, %s79
    %p86 = scmp.eq.s32.totalorder %s27, 1
    %p87 = por %p85, %p86
    %p88 = scmp.ne.s32.totalorder %s79, %s80
    %p89 = scmp.eq.s32.totalorder %s27, 0
    %p90 = por %p88, %p89
    %p91 = scmp.ne.s32.totalorder %s79, %s80
    %p92 = scmp.eq.s32.totalorder %s28, 1
    %p93 = por %p91, %p92
    %p95 = scmp.ne.s32.totalorder %s80, %s94
    %p96 = scmp.eq.s32.totalorder %s28, 0
    %p97 = por %p95, %p96
    %s99 = sadd.s32 %s98, 1
    %p102 = scmp.eq.s32.totalorder %s22, 1
    %p103 = scmp.ne.s32.totalorder %s98, %s100
    %p104 = scmp.eq.s32.totalorder %s22, 0
    %p105 = por %p103, %p104
    %p106 = scmp.ne.s32.totalorder %s98, %s100
    %p107 = scmp.eq.s32.totalorder %s27, 1
    %p108 = por %p106, %p107
    %p109 = scmp.ne.s32.totalorder %s100, %s101
    %p110 = scmp.eq.s32.totalorder %s27, 0
    %p111 = por %p109, %p110
    %p112 = scmp.ne.s32.totalorder %s100, %s101
    %p113 = scmp.eq.s32.totalorder %s28, 1
    %p114 = por %p112, %p113
    %p116 = scmp.ne.s32.totalorder %s101, %s115
    %p117 = scmp.eq.s32.totalorder %s28, 0
    %p118 = por %p116, %p117
    %s120 = sadd.s32 %s119, 1
    %p123 = scmp.eq.s32.totalorder %s22, 1
    %p124 = scmp.ne.s32.totalorder %s119, %s121
    %p125 = scmp.eq.s32.totalorder %s22, 0
    %p126 = por %p124, %p125
    %p127 = scmp.ne.s32.totalorder %s119, %s121
    %p128 = scmp.eq.s32.totalorder %s27, 1
    %p129 = por %p127, %p128
    %p130 = scmp.ne.s32.totalorder %s121, %s122
    %p131 = scmp.eq.s32.totalorder %s27, 0
    %p132 = por %p130, %p131
    %p133 = scmp.ne.s32.totalorder %s121, %s122
    %p134 = scmp.eq.s32.totalorder %s28, 1
    %p135 = por %p133, %p134
    %p137 = scmp.ne.s32.totalorder %s122, %s136
    %p138 = scmp.eq.s32.totalorder %s28, 0
    %p139 = por %p137, %p138
    %s141 = sadd.s32 %s140, 1
    %p144 = scmp.eq.s32.totalorder %s22, 1
    %p145 = scmp.ne.s32.totalorder %s140, %s142
    %p146 = scmp.eq.s32.totalorder %s22, 0
    %p147 = por %p145, %p146
    %p148 = scmp.ne.s32.totalorder %s140, %s142
    %p149 = scmp.eq.s32.totalorder %s27, 1
    %p150 = por %p148, %p149
    %p151 = scmp.ne.s32.totalorder %s142, %s143
    %p152 = scmp.eq.s32.totalorder %s27, 0
    %p153 = por %p151, %p152
    %p154 = scmp.ne.s32.totalorder %s142, %s143
    %p155 = scmp.eq.s32.totalorder %s28, 1
    %p156 = por %p154, %p155
    %p158 = scmp.ne.s32.totalorder %s143, %s157
    %p159 = scmp.eq.s32.totalorder %s28, 0
    %p160 = por %p158, %p159
    %s162 = sadd.s32 %s161, 1
    %p165 = scmp.eq.s32.totalorder %s22, 1
    %p166 = scmp.ne.s32.totalorder %s161, %s163
    %p167 = scmp.eq.s32.totalorder %s22, 0
    %p168 = por %p166, %p167
    %p169 = scmp.ne.s32.totalorder %s161, %s163
    %p170 = scmp.eq.s32.totalorder %s27, 1
    %p171 = por %p169, %p170
    %p172 = scmp.ne.s32.totalorder %s163, %s164
    %p173 = scmp.eq.s32.totalorder %s27, 0
    %p174 = por %p172, %p173
    %p175 = scmp.ne.s32.totalorder %s163, %s164
    %p176 = scmp.eq.s32.totalorder %s28, 1
    %p177 = por %p175, %p176
    %p179 = scmp.ne.s32.totalorder %s164, %s178
    %p180 = scmp.eq.s32.totalorder %s28, 0
    %p181 = por %p179, %p180
    %s183 = sadd.s32 %s182, 1
    %p186 = scmp.eq.s32.totalorder %s22, 1
    %p187 = scmp.ne.s32.totalorder %s182, %s184
    %p188 = scmp.eq.s32.totalorder %s22, 0
    %p189 = por %p187, %p188
    %p190 = scmp.ne.s32.totalorder %s182, %s184
    %p191 = scmp.eq.s32.totalorder %s27, 1
    %p192 = por %p190, %p191
    %p193 = scmp.ne.s32.totalorder %s184, %s185
    %p194 = scmp.eq.s32.totalorder %s27, 0
    %p195 = por %p193, %p194
    %p196 = scmp.ne.s32.totalorder %s184, %s185
    %p197 = scmp.eq.s32.totalorder %s28, 1
    %p198 = por %p196, %p197
    %p200 = scmp.ne.s32.totalorder %s185, %s199
    %p201 = scmp.eq.s32.totalorder %s28, 0
    %p202 = por %p200, %p201
    %s204 = sadd.s32 %s203, 1
    %p207 = scmp.eq.s32.totalorder %s22, 1
    %p208 = scmp.ne.s32.totalorder %s203, %s205
    %p209 = scmp.eq.s32.totalorder %s22, 0
    %p210 = por %p208, %p209
    %p211 = scmp.ne.s32.totalorder %s203, %s205
    %p212 = scmp.eq.s32.totalorder %s27, 1
    %p213 = por %p211, %p212
    %p214 = scmp.ne.s32.totalorder %s205, %s206
    %p215 = scmp.eq.s32.totalorder %s27, 0
    %p216 = por %p214, %p215
    %p217 = scmp.ne.s32.totalorder %s205, %s206
    %p218 = scmp.eq.s32.totalorder %s28, 1
    %p219 = por %p217, %p218
    %p221 = scmp.ne.s32.totalorder %s206, %s220
    %p222 = scmp.eq.s32.totalorder %s28, 0
    %p223 = por %p221, %p222
    %s225 = sadd.s32 %s224, 1
    %p228 = scmp.eq.s32.totalorder %s22, 1
    %p229 = scmp.ne.s32.totalorder %s224, %s226
    %p230 = scmp.eq.s32.totalorder %s22, 0
    %p231 = por %p229, %p230
    %p232 = scmp.ne.s32.totalorder %s224, %s226
    %p233 = scmp.eq.s32.totalorder %s27, 1
    %p234 = por %p232, %p233
    %p235 = scmp.ne.s32.totalorder %s226, %s227
    %p236 = scmp.eq.s32.totalorder %s27, 0
    %p237 = por %p235, %p236
    %p238 = scmp.ne.s32.totalorder %s226, %s227
    %p239 = scmp.eq.s32.totalorder %s28, 1
    %p240 = por %p238, %p239
    %p242 = scmp.ne.s32.totalorder %s227, %s241
    %p243 = scmp.eq.s32.totalorder %s28, 0
    %p244 = por %p242, %p243
    %s246 = sadd.s32 %s245, 1
    %p249 = scmp.eq.s32.totalorder %s22, 1
    %p250 = scmp.ne.s32.totalorder %s245, %s247
    %p251 = scmp.eq.s32.totalorder %s22, 0
    %p252 = por %p250, %p251
    %p253 = scmp.ne.s32.totalorder %s245, %s247
    %p254 = scmp.eq.s32.totalorder %s27, 1
    %p255 = por %p253, %p254
    %p256 = scmp.ne.s32.totalorder %s247, %s248
    %p257 = scmp.eq.s32.totalorder %s27, 0
    %p258 = por %p256, %p257
    %p259 = scmp.ne.s32.totalorder %s247, %s248
    %p260 = scmp.eq.s32.totalorder %s28, 1
    %p261 = por %p259, %p260
    %p263 = scmp.ne.s32.totalorder %s248, %s262
    %p264 = scmp.eq.s32.totalorder %s28, 0
    %p265 = por %p263, %p264
    %s267 = sadd.s32 %s266, 1
    %p270 = scmp.eq.s32.totalorder %s22, 1
    %p271 = scmp.ne.s32.totalorder %s266, %s268
    %p272 = scmp.eq.s32.totalorder %s22, 0
    %p273 = por %p271, %p272
    %p274 = scmp.ne.s32.totalorder %s266, %s268
    %p275 = scmp.eq.s32.totalorder %s27, 1
    %p276 = por %p274, %p275
    %p277 = scmp.ne.s32.totalorder %s268, %s269
    %p278 = scmp.eq.s32.totalorder %s27, 0
    %p279 = por %p277, %p278
    %p280 = scmp.ne.s32.totalorder %s268, %s269
    %p281 = scmp.eq.s32.totalorder %s28, 1
    %p282 = por %p280, %p281
    %p284 = scmp.ne.s32.totalorder %s269, %s283
    %p285 = scmp.eq.s32.totalorder %s28, 0
    %p286 = por %p284, %p285
    %s288 = sadd.s32 %s287, 1
    %p291 = scmp.eq.s32.totalorder %s22, 1
    %p292 = scmp.ne.s32.totalorder %s287, %s289
    %p293 = scmp.eq.s32.totalorder %s22, 0
    %p294 = por %p292, %p293
    %p295 = scmp.ne.s32.totalorder %s287, %s289
    %p296 = scmp.eq.s32.totalorder %s27, 1
    %p297 = por %p295, %p296
    %p298 = scmp.ne.s32.totalorder %s289, %s290
    %p299 = scmp.eq.s32.totalorder %s27, 0
    %p300 = por %p298, %p299
    %p301 = scmp.ne.s32.totalorder %s289, %s290
    %p302 = scmp.eq.s32.totalorder %s28, 1
    %p303 = por %p301, %p302
    %p305 = scmp.ne.s32.totalorder %s290, %s304
    %p306 = scmp.eq.s32.totalorder %s28, 0
    %p307 = por %p305, %p306
    %s308 = ssub.s32 %s22, %s29
    %p309 = scmp.eq.s32.totalorder %s308, 0
    %s311 = sadd.s32 %s310, 1
    %s312 = scalar_select %p309, %s310, %s311
    %p315 = pneg %p309
    %p316 = scmp.eq.s32.totalorder %s22, 1
    %p317 = por %p315, %p316
    %p318 = scmp.ne.s32.totalorder %s310, %s313
    %p319 = scmp.eq.s32.totalorder %s22, 0
    %p320 = por %p318, %p319
    %p321 = scmp.ne.s32.totalorder %s310, %s313
    %p322 = scmp.eq.s32.totalorder %s27, 1
    %p323 = por %p321, %p322
    %p324 = scmp.ne.s32.totalorder %s313, %s314
    %p325 = scmp.eq.s32.totalorder %s27, 0
    %p326 = por %p324, %p325
    %p327 = scmp.ne.s32.totalorder %s313, %s314
    %p328 = scmp.eq.s32.totalorder %s28, 1
    %p329 = por %p327, %p328
    %p331 = scmp.ne.s32.totalorder %s314, %s330
    %p332 = scmp.eq.s32.totalorder %s28, 0
    %p333 = por %p331, %p332
    %s334 = ssub.s32 %s22, %s29
    %p335 = scmp.eq.s32.totalorder %s334, 0
    %s337 = sadd.s32 %s336, 1
    %s338 = scalar_select %p335, %s336, %s337
    %p341 = pneg %p335
    %p342 = scmp.eq.s32.totalorder %s22, 1
    %p343 = por %p341, %p342
    %p344 = scmp.ne.s32.totalorder %s336, %s339
    %p345 = scmp.eq.s32.totalorder %s22, 0
    %p346 = por %p344, %p345
    %p347 = scmp.ne.s32.totalorder %s336, %s339
    %p348 = scmp.eq.s32.totalorder %s27, 1
    %p349 = por %p347, %p348
    %p350 = scmp.ne.s32.totalorder %s339, %s340
    %p351 = scmp.eq.s32.totalorder %s27, 0
    %p352 = por %p350, %p351
    %p353 = scmp.ne.s32.totalorder %s339, %s340
    %p354 = scmp.eq.s32.totalorder %s28, 1
    %p355 = por %p353, %p354
    %p357 = scmp.ne.s32.totalorder %s340, %s356
    %p358 = scmp.eq.s32.totalorder %s28, 0
    %p359 = por %p357, %p358
    %s360 = ssub.s32 %s22, %s29
    %p361 = scmp.eq.s32.totalorder %s360, 0
    %s363 = sadd.s32 %s362, 1
    %s364 = scalar_select %p361, %s362, %s363
    %p367 = pneg %p361
    %p368 = scmp.eq.s32.totalorder %s22, 1
    %p369 = por %p367, %p368
    %p370 = scmp.ne.s32.totalorder %s362, %s365
    %p371 = scmp.eq.s32.totalorder %s22, 0
    %p372 = por %p370, %p371
    %p373 = scmp.ne.s32.totalorder %s362, %s365
    %p374 = scmp.eq.s32.totalorder %s27, 1
    %p375 = por %p373, %p374
    %p376 = scmp.ne.s32.totalorder %s365, %s366
    %p377 = scmp.eq.s32.totalorder %s27, 0
    %p378 = por %p376, %p377
    %p379 = scmp.ne.s32.totalorder %s365, %s366
    %p380 = scmp.eq.s32.totalorder %s28, 1
    %p381 = por %p379, %p380
    %p383 = scmp.ne.s32.totalorder %s366, %s382
    %p384 = scmp.eq.s32.totalorder %s28, 0
    %p385 = por %p383, %p384
    %p386 = scmp.le.s32.totalorder 1, %s22
    %p387 = scmp.lt.s32.totalorder %s22, 3
    %p388 = pnand %p386, %p387
    %p389 = pneg %p388
    // Predicated region
    $region9: #{mh_mamba_block.2} parent=5 // pred_check
      _
    $region10: #{mh_mamba_block.2} parent=5 // pred_check_branch
      %391 = sbr.rel (%p388) target = $region12
    $region11: #{mh_mamba_block.2} parent=5 // pred_region
      %s392 = ssub.s32 %s22, 1
      // Predicated region
      $region13: #{mh_mamba_block.2} parent=11 // pred_check
        %p393 = pneg %p69
      $region14: #{mh_mamba_block.2} parent=11 // pred_check_branch
        %395 = sbr.rel (%p393) target = $region16
      $region15: #{mh_mamba_block.2} parent=11 // pred_region
        _
      $region16: #{mh_mamba_block.2} parent=11 // pred_fallthru
        _
      // Predicated region
      $region17: #{mh_mamba_block.2} parent=11 // pred_check
        %p396 = pneg %p90
      $region18: #{mh_mamba_block.2} parent=11 // pred_check_branch
        %398 = sbr.rel (%p396) target = $region20
      $region19: #{mh_mamba_block.2} parent=11 // pred_region
        _
      $region20: #{mh_mamba_block.2} parent=11 // pred_fallthru
        _
      // Predicated region
      $region21: #{mh_mamba_block.2} parent=11 // pred_check
        %p399 = pneg %p111
      $region22: #{mh_mamba_block.2} parent=11 // pred_check_branch
        %401 = sbr.rel (%p399) target = $region24
      $region23: #{mh_mamba_block.2} parent=11 // pred_region
        _
      $region24: #{mh_mamba_block.2} parent=11 // pred_fallthru
        _
      // Predicated region
      $region25: #{mh_mamba_block.2} parent=11 // pred_check
        %p402 = pneg %p132
      $region26: #{mh_mamba_block.2} parent=11 // pred_check_branch
        %404 = sbr.rel (%p402) target = $region28
      $region27: #{mh_mamba_block.2} parent=11 // pred_region
        _
      $region28: #{mh_mamba_block.2} parent=11 // pred_fallthru
        _
      // Predicated region
      $region29: #{mh_mamba_block.2} parent=11 // pred_check
        %p405 = pneg %p153
      $region30: #{mh_mamba_block.2} parent=11 // pred_check_branch
        %407 = sbr.rel (%p405) target = $region32
      $region31: #{mh_mamba_block.2} parent=11 // pred_region
        _
      $region32: #{mh_mamba_block.2} parent=11 // pred_fallthru
        _
      // Predicated region
      $region33: #{mh_mamba_block.2} parent=11 // pred_check
        %p408 = pneg %p174
      $region34: #{mh_mamba_block.2} parent=11 // pred_check_branch
        %410 = sbr.rel (%p408) target = $region36
      $region35: #{mh_mamba_block.2} parent=11 // pred_region
        _
      $region36: #{mh_mamba_block.2} parent=11 // pred_fallthru
        _
      // Predicated region
      $region37: #{mh_mamba_block.2} parent=11 // pred_check
        %p411 = pneg %p195
      $region38: #{mh_mamba_block.2} parent=11 // pred_check_branch
        %413 = sbr.rel (%p411) target = $region40
      $region39: #{mh_mamba_block.2} parent=11 // pred_region
        _
      $region40: #{mh_mamba_block.2} parent=11 // pred_fallthru
        _
      // Predicated region
      $region41: #{mh_mamba_block.2} parent=11 // pred_check
        %p414 = pneg %p216
      $region42: #{mh_mamba_block.2} parent=11 // pred_check_branch
        %416 = sbr.rel (%p414) target = $region44
      $region43: #{mh_mamba_block.2} parent=11 // pred_region
        _
      $region44: #{mh_mamba_block.2} parent=11 // pred_fallthru
        _
      // Predicated region
      $region45: #{mh_mamba_block.2} parent=11 // pred_check
        %p417 = pneg %p237
      $region46: #{mh_mamba_block.2} parent=11 // pred_check_branch
        %419 = sbr.rel (%p417) target = $region48
      $region47: #{mh_mamba_block.2} parent=11 // pred_region
        _
      $region48: #{mh_mamba_block.2} parent=11 // pred_fallthru
        _
      // Predicated region
      $region49: #{mh_mamba_block.2} parent=11 // pred_check
        %p420 = pneg %p258
      $region50: #{mh_mamba_block.2} parent=11 // pred_check_branch
        %422 = sbr.rel (%p420) target = $region52
      $region51: #{mh_mamba_block.2} parent=11 // pred_region
        _
      $region52: #{mh_mamba_block.2} parent=11 // pred_fallthru
        _
      // Predicated region
      $region53: #{mh_mamba_block.2} parent=11 // pred_check
        %p423 = pneg %p279
      $region54: #{mh_mamba_block.2} parent=11 // pred_check_branch
        %425 = sbr.rel (%p423) target = $region56
      $region55: #{mh_mamba_block.2} parent=11 // pred_region
        _
      $region56: #{mh_mamba_block.2} parent=11 // pred_fallthru
        _
      // Predicated region
      $region57: #{mh_mamba_block.2} parent=11 // pred_check
        %p426 = pneg %p300
      $region58: #{mh_mamba_block.2} parent=11 // pred_check_branch
        %428 = sbr.rel (%p426) target = $region60
      $region59: #{mh_mamba_block.2} parent=11 // pred_region
        _
      $region60: #{mh_mamba_block.2} parent=11 // pred_fallthru
        _
    $region12: #{mh_mamba_block.2} parent=5 // pred_fallthru
      _
    %p429 = scmp.lt.s32.totalorder %s22, 2
    // Predicated region
    $region61: #{mh_mamba_block.2} parent=5 // pred_check
      %p430 = pneg %p429
    $region62: #{mh_mamba_block.2} parent=5 // pred_check_branch
      %432 = sbr.rel (%p430) target = $region64
    $region63: #{mh_mamba_block.2} parent=5 // pred_region
      // Predicated region
      $region65: #{mh_mamba_block.2} parent=63 // pred_check
        %p433 = pneg %p42
      $region66: #{mh_mamba_block.2} parent=63 // pred_check_branch
        %435 = sbr.rel (%p433) target = $region68
      $region67: #{mh_mamba_block.2} parent=63 // pred_region
        %p436 = scmp.lt.s32.totalorder %s22, 1
        %s437 = scalar_select %p436, %s22, 1
        %s438 = smul.addr %s437, 8
        %s439 = smul.addr %s438, 8
        %s440 = scalar_lea.vmem %s0, %s439
      $region68: #{mh_mamba_block.2} parent=63 // pred_fallthru
        _
    $region64: #{mh_mamba_block.2} parent=5 // pred_fallthru
      _
    %p441 = scmp.le.s32.totalorder 1, %s22
    %p442 = scmp.lt.s32.totalorder %s22, 3
    %p443 = pnand %p441, %p442
    %p444 = pneg %p443
    // Predicated region
    $region69: #{mh_mamba_block.2} parent=5 // pred_check
      _
    $region70: #{mh_mamba_block.2} parent=5 // pred_check_branch
      %446 = sbr.rel (%p443) target = $region72
    $region71: #{mh_mamba_block.2} parent=5 // pred_region
      %s447 = ssub.s32 %s22, 1
      %p448 = scmp.lt.s32.totalorder %s27, 1
      %s449 = scalar_select %p448, %s27, 1
      %s450 = smul.addr %s449, 8
      %s451 = smul.addr %s450, 8
      %s452 = scalar_lea.vmem %s0, %s451
      %p453 = pneg %p48
      %p454 = pneg %p45
      %p455 = pneg %p69
      %p456 = pneg %p66
      %p457 = pneg %p90
      %p458 = pneg %p87
      %p459 = pneg %p111
      %p460 = pneg %p108
      %p461 = pneg %p132
      %p462 = pneg %p129
      %p463 = pneg %p153
      %p464 = pneg %p150
      %p465 = pneg %p174
      %p466 = pneg %p171
      %p467 = pneg %p195
      %p468 = pneg %p192
      %p469 = pneg %p216
      %p470 = pneg %p213
      %p471 = pneg %p237
      %p472 = pneg %p234
      %p473 = pneg %p258
      %p474 = pneg %p255
      %p475 = pneg %p279
      %p476 = pneg %p276
      %p477 = pneg %p300
      %p478 = pneg %p297
      %p479 = pneg %p326
      %p480 = pneg %p323
      %p481 = scmp.lt.s32.totalorder %s27, 1
      %s482 = scalar_select %p481, %s27, 1
      %s483 = smul.addr %s482, 8
      %s484 = smul.addr %s483, 8
      %s485 = scalar_lea.vmem %s13, %s484
      %p486 = pneg %p352
      %p487 = pneg %p349
      %p488 = scmp.lt.s32.totalorder %s27, 1
      %s489 = scalar_select %p488, %s27, 1
      %s490 = smul.addr %s489, 4
      %s491 = smul.addr %s490, 8
      %s492 = scalar_lea.vmem %s14, %s491
      %p493 = pneg %p378
      %p494 = pneg %p375
      %p495 = scmp.lt.s32.totalorder %s27, 1
      %s496 = scalar_select %p495, %s27, 1
      %s497 = smul.addr %s496, 4
      %s498 = smul.addr %s497, 8
      %s499 = scalar_lea.vmem %s15, %s498
      %p500 = scmp.lt.s32.totalorder %s27, 1
      %s501 = scalar_select %p500, %s27, 1
      %s502 = smul.addr %s501, 8
      %s503 = smul.addr %s502, 8
      %s504 = scalar_lea.vmem %s0, %s503
      %p505 = scmp.lt.s32.totalorder %s27, 1
      %s506 = scalar_select %p505, %s27, 1
      %s507 = smul.addr %s506, 8
      %s508 = smul.addr %s507, 8
      %s509 = scalar_lea.vmem %s13, %s508
      %p510 = scmp.lt.s32.totalorder %s27, 1
      %s511 = scalar_select %p510, %s27, 1
      %s512 = smul.addr %s511, 4
      %s513 = smul.addr %s512, 8
      %s514 = scalar_lea.vmem %s14, %s513
      %p515 = scmp.lt.s32.totalorder %s27, 1
      %s516 = scalar_select %p515, %s27, 1
      %s517 = smul.addr %s516, 4
      %s518 = smul.addr %s517, 8
      %s519 = scalar_lea.vmem %s15, %s518
      %v521 = vld [vmem:[%s504] sm:$0xff]
      %v522 = vld [vmem:[%s504 + $0x8] sm:$0xff]
      %v523 = vld [vmem:[%s504 + $0x10] sm:$0xff]
      %v524 = vld [vmem:[%s504 + $0x18] sm:$0xff]
      %v525 = vld [vmem:[%s504 + $0x20] sm:$0xff]
      %v526 = vld [vmem:[%s504 + $0x28] sm:$0xff]
      %v527 = vld [vmem:[%s504 + $0x30] sm:$0xff]
      %v528 = vld [vmem:[%s504 + $0x38] sm:$0xff]
      %v529 = vld [vmem:[%s1] sm:$0x3]
      %v530 = vperm.slane %v529, 0
      %v531 = vperm.slane %v529, 1
      %v532 = vld [vmem:[%s2] sm:$0x3]
      %v533 = vperm.slane %v532, 0
      %v534 = vperm.slane %v532, 1
      %v535 = vld [vmem:[%s3] sm:$0xf]
      %v536 = vld [vmem:[%s3 + $0x4] sm:$0xf]
      %v537 = vld [vmem:[%s3 + $0x8] sm:$0xf]
      %v538 = vld [vmem:[%s3 + $0xc] sm:$0xf]
      %v539 = vpack.c.bf16 %v523, %v521
      %v540 = vpack.c.bf16 %v524, %v522
      %v541 = vpack.c.bf16 %v527, %v525
      %v542 = vpack.c.bf16 %v528, %v526
      %v543 = vld [vmem:[%s4] sm:$0xff]
      %v544 = vld [vmem:[%s4 + $0x8] sm:$0xff]
      %v545 = vld [vmem:[%s4 + $0x10] sm:$0xff]
      %v546 = vld [vmem:[%s4 + $0x18] sm:$0xff]
      %548 = vset.pattern.permute.xlu0 0
      %549 = vperm.xlu0 %548, %v543
      %v550 = vpop.permute.xlu0 %549
      %553 = vset.pattern.permute.xlu0 0
      %554 = vperm.xlu0 %553, %v544
      %v555 = vpop.permute.xlu0 %554
      %558 = vset.pattern.permute.xlu0 0
      %559 = vperm.xlu0 %558, %v545
      %v560 = vpop.permute.xlu0 %559
      %563 = vset.pattern.permute.xlu0 0
      %564 = vperm.xlu0 %563, %v546
      %v565 = vpop.permute.xlu0 %564
      %v571 = vunpack.c.l.b16 %v535
      %v572 = vunpack.c.l.b16 %v536
      %v573 = vunpack.c.l.b16 %v537
      %v574 = vunpack.c.l.b16 %v538
      %v575 = vpack.c.b16 %v572, %v571
      %v576 = vpack.c.b16 %v574, %v573
      %vm577 = vcmask 261120
      %v579 = vsel %vm577, %v575, 0
      %v582 = vsel %vm577, %v576, 0
      %584 = vmatpush.bf16.msra.mxu0 0
      %585 = vmatpush.bf16.msra.mxu0 0
      %586 = vmatpush.bf16.msra.mxu0 0
      %587 = vmatpush.bf16.msra.mxu0 0
      %588 = vmatpush.bf16.msra.mxu0 0
      %589 = vmatpush.bf16.msra.mxu0 0
      %590 = vmatpush.bf16.msra.mxu0 %v541
      %591 = vmatpush.bf16.msra.mxu0 %v539
      %592 = vmatmul.bf16.gmra.mxu0 %v579
      %v593 = vpop.f32.mrf.mxu0
      %v594 = vadd.f32 %v550, %v593
      %v595 = vpop.f32.mrf.mxu0
      %v596 = vadd.f32 %v555, %v595
      %597 = vmatmul.bf16.gmra.mxu0 %v582
      %v598 = vpop.f32.mrf.mxu0
      %v599 = vadd.f32 %v560, %v598
      %v600 = vpop.f32.mrf.mxu0
      %v601 = vadd.f32 %v565, %v600
      %602 = vdwg.mxu0
      %603 = vmatpush.bf16.msra.mxu0 0
      %604 = vmatpush.bf16.msra.mxu0 0
      %605 = vmatpush.bf16.msra.mxu0 0
      %606 = vmatpush.bf16.msra.mxu0 0
      %607 = vmatpush.bf16.msra.mxu0 0
      %608 = vmatpush.bf16.msra.mxu0 0
      %609 = vmatpush.bf16.msra.mxu0 %v542
      %610 = vmatpush.bf16.msra.mxu0 %v540
      %611 = vmatmul.bf16.gmra.mxu0 %v579
      %v612 = vpop.f32.mrf.mxu0
      %v613 = vadd.f32 %v550, %v612
      %v614 = vpop.f32.mrf.mxu0
      %v615 = vadd.f32 %v555, %v614
      %616 = vmatmul.bf16.gmra.mxu0 %v582
      %v617 = vpop.f32.mrf.mxu0
      %v618 = vadd.f32 %v560, %v617
      %v619 = vpop.f32.mrf.mxu0
      %v620 = vadd.f32 %v565, %v619
      %621 = vdwg.mxu0
      %v622 = vld [vmem:[%s5] sm:$0xff]
      %v623 = vld [vmem:[%s5 + $0x8] sm:$0xff]
      %v624 = vld [vmem:[%s5 + $0x10] sm:$0xff]
      %v625 = vld [vmem:[%s5 + $0x18] sm:$0xff]
      %v626 = vld [vmem:[%s7] sm:$0xff]
      %v627 = vld [vmem:[%s7 + $0x8] sm:$0xff]
      %v628 = vld [vmem:[%s7 + $0x10] sm:$0xff]
      %v629 = vld [vmem:[%s7 + $0x18] sm:$0xff]
      %631 = vset.pattern.permute.xlu0 2
      %632 = vperm.xlu0 %631, %v622
      %v633 = vpop.permute.xlu0 %632
      %636 = vset.pattern.permute.xlu0 2
      %637 = vperm.xlu0 %636, %v623
      %v638 = vpop.permute.xlu0 %637
      %641 = vset.pattern.permute.xlu0 2
      %642 = vperm.xlu0 %641, %v624
      %v643 = vpop.permute.xlu0 %642
      %646 = vset.pattern.permute.xlu0 2
      %647 = vperm.xlu0 %646, %v625
      %v648 = vpop.permute.xlu0 %647
      %v650 = vmul.f32 %v594, %v633
      %v651 = vmul.f32 %v613, %v633
      %v652 = vmul.f32 %v596, %v638
      %v653 = vmul.f32 %v615, %v638
      %v654 = vmul.f32 %v599, %v643
      %v655 = vmul.f32 %v618, %v643
      %v656 = vmul.f32 %v601, %v648
      %v657 = vmul.f32 %v620, %v648
      %659 = vset.pattern.permute.xlu0 2
      %660 = vperm.xlu0 %659, %v626
      %v661 = vpop.permute.xlu0 %660
      %664 = vset.pattern.permute.xlu0 2
      %665 = vperm.xlu0 %664, %v627
      %v666 = vpop.permute.xlu0 %665
      %669 = vset.pattern.permute.xlu0 2
      %670 = vperm.xlu0 %669, %v628
      %v671 = vpop.permute.xlu0 %670
      %674 = vset.pattern.permute.xlu0 2
      %675 = vperm.xlu0 %674, %v629
      %v676 = vpop.permute.xlu0 %675
      %v678 = vmul.f32 %v594, %v661
      %v679 = vmul.f32 %v613, %v661
      %v680 = vmul.f32 %v596, %v666
      %v681 = vmul.f32 %v615, %v666
      %v682 = vmul.f32 %v599, %v671
      %v683 = vmul.f32 %v618, %v671
      %v684 = vmul.f32 %v601, %v676
      %v685 = vmul.f32 %v620, %v676
      %686 = vrot.lane.b32.xlu0 %v594, 32
      %v687 = vpop.permute.xlu0 %686
      %688 = vrot.lane.b32.xlu0 %v596, 32
      %v689 = vpop.permute.xlu0 %688
      %690 = vrot.lane.b32.xlu0 %v599, 32
      %v691 = vpop.permute.xlu0 %690
      %692 = vrot.lane.b32.xlu0 %v601, 32
      %v693 = vpop.permute.xlu0 %692
      %694 = vrot.lane.b32.xlu0 %v613, 32
      %v695 = vpop.permute.xlu0 %694
      %696 = vrot.lane.b32.xlu0 %v615, 32
      %v697 = vpop.permute.xlu0 %696
      %698 = vrot.lane.b32.xlu0 %v618, 32
      %v699 = vpop.permute.xlu0 %698
      %700 = vrot.lane.b32.xlu0 %v620, 32
      %v701 = vpop.permute.xlu0 %700
      %v702 = vlaneseq
      %v703 = vand.u32 %v702, 127
      %vm704 = vcmp.lt.s32.totalorder %v703, 32
      %v705 = vsel %vm704, %v687, %v695
      %v706 = vsel %vm704, %v689, %v697
      %v707 = vsel %vm704, %v691, %v699
      %v708 = vsel %vm704, %v693, %v701
      %v709 = vsel %vm704, %v695, %v687
      %v710 = vsel %vm704, %v697, %v689
      %v711 = vsel %vm704, %v699, %v691
      %v712 = vsel %vm704, %v701, %v693
      %v713 = vadd.s32 %v530, 4294967294
      %v714 = vadd.s32 %v531, 4294967294
      %vm715 = vcmp.ge.s32.totalorder %v713, 0
      %vm716 = vcmp.ge.s32.totalorder %v714, 0
      %vm717 = vcmp.lt.s32.totalorder %v713, 16
      %vm718 = vcmp.lt.s32.totalorder %v714, 16
      %vm719 = vmand %vm715, %vm717
      %vm720 = vmand %vm716, %vm718
      %v721 = vsel %vm719, %v709, 0.0
      %v722 = vsel %vm720, %v705, 0.0
      %v723 = vsel %vm719, %v710, 0.0
      %v724 = vsel %vm720, %v706, 0.0
      %v725 = vsel %vm719, %v711, 0.0
      %v726 = vsel %vm720, %v707, 0.0
      %v727 = vsel %vm719, %v712, 0.0
      %v728 = vsel %vm720, %v708, 0.0
      %729 = vset.pattern.permute.xlu0 0
      %730 = vperm.xlu0 %729, %v622
      %v731 = vpop.permute.xlu0 %730
      %733 = vset.pattern.permute.xlu0 0
      %734 = vperm.xlu0 %733, %v623
      %v735 = vpop.permute.xlu0 %734
      %737 = vset.pattern.permute.xlu0 0
      %738 = vperm.xlu0 %737, %v624
      %v739 = vpop.permute.xlu0 %738
      %741 = vset.pattern.permute.xlu0 0
      %742 = vperm.xlu0 %741, %v625
      %v743 = vpop.permute.xlu0 %742
      %v745 = vmul.f32 %v721, %v731
      %v746 = vmul.f32 %v722, %v731
      %v747 = vmul.f32 %v723, %v735
      %v748 = vmul.f32 %v724, %v735
      %v749 = vmul.f32 %v725, %v739
      %v750 = vmul.f32 %v726, %v739
      %v751 = vmul.f32 %v727, %v743
      %v752 = vmul.f32 %v728, %v743
      %v753 = vadd.f32 %v650, %v745
      %v754 = vadd.f32 %v651, %v746
      %v755 = vadd.f32 %v652, %v747
      %v756 = vadd.f32 %v653, %v748
      %v757 = vadd.f32 %v654, %v749
      %v758 = vadd.f32 %v655, %v750
      %v759 = vadd.f32 %v656, %v751
      %v760 = vadd.f32 %v657, %v752
      %761 = vrot.lane.b32.xlu0 %v594, 2
      %v762 = vpop.permute.xlu0 %761
      %763 = vrot.lane.b32.xlu0 %v596, 2
      %v764 = vpop.permute.xlu0 %763
      %765 = vrot.lane.b32.xlu0 %v599, 2
      %v766 = vpop.permute.xlu0 %765
      %767 = vrot.lane.b32.xlu0 %v601, 2
      %v768 = vpop.permute.xlu0 %767
      %769 = vrot.lane.b32.xlu0 %v613, 2
      %v770 = vpop.permute.xlu0 %769
      %771 = vrot.lane.b32.xlu0 %v615, 2
      %v772 = vpop.permute.xlu0 %771
      %773 = vrot.lane.b32.xlu0 %v618, 2
      %v774 = vpop.permute.xlu0 %773
      %775 = vrot.lane.b32.xlu0 %v620, 2
      %v776 = vpop.permute.xlu0 %775
      %vm777 = vcmp.lt.s32.totalorder %v703, 2
      %v778 = vsel %vm777, %v762, %v770
      %v779 = vsel %vm777, %v764, %v772
      %v780 = vsel %vm777, %v766, %v774
      %v781 = vsel %vm777, %v768, %v776
      %v782 = vsel %vm777, %v770, %v762
      %v783 = vsel %vm777, %v772, %v764
      %v784 = vsel %vm777, %v774, %v766
      %v785 = vsel %vm777, %v776, %v768
      %v786 = vadd.s32 %v533, 4294967294
      %v787 = vadd.s32 %v534, 4294967294
      %vm788 = vcmp.ge.s32.totalorder %v786, 0
      %vm789 = vcmp.ge.s32.totalorder %v787, 0
      %vm790 = vcmp.lt.s32.totalorder %v786, 16
      %vm791 = vcmp.lt.s32.totalorder %v787, 16
      %vm792 = vmand %vm788, %vm790
      %vm793 = vmand %vm789, %vm791
      %v794 = vsel %vm792, %v782, 0.0
      %v795 = vsel %vm793, %v778, 0.0
      %v796 = vsel %vm792, %v783, 0.0
      %v797 = vsel %vm793, %v779, 0.0
      %v798 = vsel %vm792, %v784, 0.0
      %v799 = vsel %vm793, %v780, 0.0
      %v800 = vsel %vm792, %v785, 0.0
      %v801 = vsel %vm793, %v781, 0.0
      %802 = vset.pattern.permute.xlu0 0
      %803 = vperm.xlu0 %802, %v626
      %v804 = vpop.permute.xlu0 %803
      %806 = vset.pattern.permute.xlu0 0
      %807 = vperm.xlu0 %806, %v627
      %v808 = vpop.permute.xlu0 %807
      %810 = vset.pattern.permute.xlu0 0
      %811 = vperm.xlu0 %810, %v628
      %v812 = vpop.permute.xlu0 %811
      %814 = vset.pattern.permute.xlu0 0
      %815 = vperm.xlu0 %814, %v629
      %v816 = vpop.permute.xlu0 %815
      %v818 = vmul.f32 %v794, %v804
      %v819 = vmul.f32 %v795, %v804
      %v820 = vmul.f32 %v796, %v808
      %v821 = vmul.f32 %v797, %v808
      %v822 = vmul.f32 %v798, %v812
      %v823 = vmul.f32 %v799, %v812
      %v824 = vmul.f32 %v800, %v816
      %v825 = vmul.f32 %v801, %v816
      %v826 = vadd.f32 %v678, %v818
      %v827 = vadd.f32 %v679, %v819
      %v828 = vadd.f32 %v680, %v820
      %v829 = vadd.f32 %v681, %v821
      %v830 = vadd.f32 %v682, %v822
      %v831 = vadd.f32 %v683, %v823
      %v832 = vadd.f32 %v684, %v824
      %v833 = vadd.f32 %v685, %v825
      %834 = vrot.lane.b32.xlu0 %v594, 16
      %v835 = vpop.permute.xlu0 %834
      %836 = vrot.lane.b32.xlu0 %v596, 16
      %v837 = vpop.permute.xlu0 %836
      %838 = vrot.lane.b32.xlu0 %v599, 16
      %v839 = vpop.permute.xlu0 %838
      %840 = vrot.lane.b32.xlu0 %v601, 16
      %v841 = vpop.permute.xlu0 %840
      %842 = vrot.lane.b32.xlu0 %v613, 16
      %v843 = vpop.permute.xlu0 %842
      %844 = vrot.lane.b32.xlu0 %v615, 16
      %v845 = vpop.permute.xlu0 %844
      %846 = vrot.lane.b32.xlu0 %v618, 16
      %v847 = vpop.permute.xlu0 %846
      %848 = vrot.lane.b32.xlu0 %v620, 16
      %v849 = vpop.permute.xlu0 %848
      %vm850 = vcmp.lt.s32.totalorder %v703, 16
      %v851 = vsel %vm850, %v835, %v843
      %v852 = vsel %vm850, %v837, %v845
      %v853 = vsel %vm850, %v839, %v847
      %v854 = vsel %vm850, %v841, %v849
      %v855 = vsel %vm850, %v843, %v835
      %v856 = vsel %vm850, %v845, %v837
      %v857 = vsel %vm850, %v847, %v839
      %v858 = vsel %vm850, %v849, %v841
      %v859 = vadd.s32 %v530, 4294967295
      %v860 = vadd.s32 %v531, 4294967295
      %vm861 = vcmp.ge.s32.totalorder %v859, 0
      %vm862 = vcmp.ge.s32.totalorder %v860, 0
      %vm863 = vcmp.lt.s32.totalorder %v859, 16
      %vm864 = vcmp.lt.s32.totalorder %v860, 16
      %vm865 = vmand %vm861, %vm863
      %vm866 = vmand %vm862, %vm864
      %v867 = vsel %vm865, %v855, 0.0
      %v868 = vsel %vm866, %v851, 0.0
      %v869 = vsel %vm865, %v856, 0.0
      %v870 = vsel %vm866, %v852, 0.0
      %v871 = vsel %vm865, %v857, 0.0
      %v872 = vsel %vm866, %v853, 0.0
      %v873 = vsel %vm865, %v858, 0.0
      %v874 = vsel %vm866, %v854, 0.0
      %875 = vset.pattern.permute.xlu0 1
      %876 = vperm.xlu0 %875, %v622
      %v877 = vpop.permute.xlu0 %876
      %879 = vset.pattern.permute.xlu0 1
      %880 = vperm.xlu0 %879, %v623
      %v881 = vpop.permute.xlu0 %880
      %883 = vset.pattern.permute.xlu0 1
      %884 = vperm.xlu0 %883, %v624
      %v885 = vpop.permute.xlu0 %884
      %887 = vset.pattern.permute.xlu0 1
      %888 = vperm.xlu0 %887, %v625
      %v889 = vpop.permute.xlu0 %888
      %v891 = vmul.f32 %v867, %v877
      %v892 = vmul.f32 %v868, %v877
      %v893 = vmul.f32 %v869, %v881
      %v894 = vmul.f32 %v870, %v881
      %v895 = vmul.f32 %v871, %v885
      %v896 = vmul.f32 %v872, %v885
      %v897 = vmul.f32 %v873, %v889
      %v898 = vmul.f32 %v874, %v889
      %v899 = vadd.f32 %v753, %v891
      %v900 = vadd.f32 %v754, %v892
      %v901 = vadd.f32 %v755, %v893
      %v902 = vadd.f32 %v756, %v894
      %v903 = vadd.f32 %v757, %v895
      %v904 = vadd.f32 %v758, %v896
      %v905 = vadd.f32 %v759, %v897
      %v906 = vadd.f32 %v760, %v898
      %907 = vrot.lane.b32.xlu0 %v594, 1
      %v908 = vpop.permute.xlu0 %907
      %909 = vrot.lane.b32.xlu0 %v596, 1
      %v910 = vpop.permute.xlu0 %909
      %911 = vrot.lane.b32.xlu0 %v599, 1
      %v912 = vpop.permute.xlu0 %911
      %913 = vrot.lane.b32.xlu0 %v601, 1
      %v914 = vpop.permute.xlu0 %913
      %915 = vrot.lane.b32.xlu0 %v613, 1
      %v916 = vpop.permute.xlu0 %915
      %917 = vrot.lane.b32.xlu0 %v615, 1
      %v918 = vpop.permute.xlu0 %917
      %919 = vrot.lane.b32.xlu0 %v618, 1
      %v920 = vpop.permute.xlu0 %919
      %921 = vrot.lane.b32.xlu0 %v620, 1
      %v922 = vpop.permute.xlu0 %921
      %vm923 = vcmp.lt.s32.totalorder %v703, 1
      %v924 = vsel %vm923, %v908, %v916
      %v925 = vsel %vm923, %v910, %v918
      %v926 = vsel %vm923, %v912, %v920
      %v927 = vsel %vm923, %v914, %v922
      %v928 = vsel %vm923, %v916, %v908
      %v929 = vsel %vm923, %v918, %v910
      %v930 = vsel %vm923, %v920, %v912
      %v931 = vsel %vm923, %v922, %v914
      %v932 = vadd.s32 %v533, 4294967295
      %v933 = vadd.s32 %v534, 4294967295
      %vm934 = vcmp.ge.s32.totalorder %v932, 0
      %vm935 = vcmp.ge.s32.totalorder %v933, 0
      %vm936 = vcmp.lt.s32.totalorder %v932, 16
      %vm937 = vcmp.lt.s32.totalorder %v933, 16
      %vm938 = vmand %vm934, %vm936
      %vm939 = vmand %vm935, %vm937
      %v940 = vsel %vm938, %v928, 0.0
      %v941 = vsel %vm939, %v924, 0.0
      %v942 = vsel %vm938, %v929, 0.0
      %v943 = vsel %vm939, %v925, 0.0
      %v944 = vsel %vm938, %v930, 0.0
      %v945 = vsel %vm939, %v926, 0.0
      %v946 = vsel %vm938, %v931, 0.0
      %v947 = vsel %vm939, %v927, 0.0
      %948 = vset.pattern.permute.xlu0 1
      %949 = vperm.xlu0 %948, %v626
      %v950 = vpop.permute.xlu0 %949
      %952 = vset.pattern.permute.xlu0 1
      %953 = vperm.xlu0 %952, %v627
      %v954 = vpop.permute.xlu0 %953
      %956 = vset.pattern.permute.xlu0 1
      %957 = vperm.xlu0 %956, %v628
      %v958 = vpop.permute.xlu0 %957
      %960 = vset.pattern.permute.xlu0 1
      %961 = vperm.xlu0 %960, %v629
      %v962 = vpop.permute.xlu0 %961
      %v964 = vmul.f32 %v940, %v950
      %v965 = vmul.f32 %v941, %v950
      %v966 = vmul.f32 %v942, %v954
      %v967 = vmul.f32 %v943, %v954
      %v968 = vmul.f32 %v944, %v958
      %v969 = vmul.f32 %v945, %v958
      %v970 = vmul.f32 %v946, %v962
      %v971 = vmul.f32 %v947, %v962
      %v972 = vadd.f32 %v826, %v964
      %v973 = vadd.f32 %v827, %v965
      %v974 = vadd.f32 %v828, %v966
      %v975 = vadd.f32 %v829, %v967
      %v976 = vadd.f32 %v830, %v968
      %v977 = vadd.f32 %v831, %v969
      %v978 = vadd.f32 %v832, %v970
      %v979 = vadd.f32 %v833, %v971
      %980 = vrot.lane.b32.xlu0 %v594, 112
      %v981 = vpop.permute.xlu0 %980
      %982 = vrot.lane.b32.xlu0 %v596, 112
      %v983 = vpop.permute.xlu0 %982
      %984 = vrot.lane.b32.xlu0 %v599, 112
      %v985 = vpop.permute.xlu0 %984
      %986 = vrot.lane.b32.xlu0 %v601, 112
      %v987 = vpop.permute.xlu0 %986
      %988 = vrot.lane.b32.xlu0 %v613, 112
      %v989 = vpop.permute.xlu0 %988
      %990 = vrot.lane.b32.xlu0 %v615, 112
      %v991 = vpop.permute.xlu0 %990
      %992 = vrot.lane.b32.xlu0 %v618, 112
      %v993 = vpop.permute.xlu0 %992
      %994 = vrot.lane.b32.xlu0 %v620, 112
      %v995 = vpop.permute.xlu0 %994
      %vm996 = vcmp.lt.s32.totalorder %v703, 112
      %v997 = vsel %vm996, %v981, %v989
      %v998 = vsel %vm996, %v983, %v991
      %v999 = vsel %vm996, %v985, %v993
      %v1000 = vsel %vm996, %v987, %v995
      %v1001 = vsel %vm996, %v989, %v981
      %v1002 = vsel %vm996, %v991, %v983
      %v1003 = vsel %vm996, %v993, %v985
      %v1004 = vsel %vm996, %v995, %v987
      %v1005 = vadd.s32 %v530, 1
      %v1006 = vadd.s32 %v531, 1
      %vm1007 = vcmp.ge.s32.totalorder %v1005, 0
      %vm1008 = vcmp.ge.s32.totalorder %v1006, 0
      %vm1009 = vcmp.lt.s32.totalorder %v1005, 16
      %vm1010 = vcmp.lt.s32.totalorder %v1006, 16
      %vm1011 = vmand %vm1007, %vm1009
      %vm1012 = vmand %vm1008, %vm1010
      %v1013 = vsel %vm1011, %v997, 0.0
      %v1014 = vsel %vm1012, %v1001, 0.0
      %v1015 = vsel %vm1011, %v998, 0.0
      %v1016 = vsel %vm1012, %v1002, 0.0
      %v1017 = vsel %vm1011, %v999, 0.0
      %v1018 = vsel %vm1012, %v1003, 0.0
      %v1019 = vsel %vm1011, %v1000, 0.0
      %v1020 = vsel %vm1012, %v1004, 0.0
      %1021 = vset.pattern.permute.xlu0 3
      %1022 = vperm.xlu0 %1021, %v622
      %v1023 = vpop.permute.xlu0 %1022
      %1025 = vset.pattern.permute.xlu0 3
      %1026 = vperm.xlu0 %1025, %v623
      %v1027 = vpop.permute.xlu0 %1026
      %1029 = vset.pattern.permute.xlu0 3
      %1030 = vperm.xlu0 %1029, %v624
      %v1031 = vpop.permute.xlu0 %1030
      %1033 = vset.pattern.permute.xlu0 3
      %1034 = vperm.xlu0 %1033, %v625
      %v1035 = vpop.permute.xlu0 %1034
      %v1037 = vmul.f32 %v1013, %v1023
      %v1038 = vmul.f32 %v1014, %v1023
      %v1039 = vmul.f32 %v1015, %v1027
      %v1040 = vmul.f32 %v1016, %v1027
      %v1041 = vmul.f32 %v1017, %v1031
      %v1042 = vmul.f32 %v1018, %v1031
      %v1043 = vmul.f32 %v1019, %v1035
      %v1044 = vmul.f32 %v1020, %v1035
      %v1045 = vadd.f32 %v899, %v1037
      %v1046 = vadd.f32 %v900, %v1038
      %v1047 = vadd.f32 %v901, %v1039
      %v1048 = vadd.f32 %v902, %v1040
      %v1049 = vadd.f32 %v903, %v1041
      %v1050 = vadd.f32 %v904, %v1042
      %v1051 = vadd.f32 %v905, %v1043
      %v1052 = vadd.f32 %v906, %v1044
      %1053 = vrot.lane.b32.xlu0 %v594, 127
      %v1054 = vpop.permute.xlu0 %1053
      %1055 = vrot.lane.b32.xlu0 %v596, 127
      %v1056 = vpop.permute.xlu0 %1055
      %1057 = vrot.lane.b32.xlu0 %v599, 127
      %v1058 = vpop.permute.xlu0 %1057
      %1059 = vrot.lane.b32.xlu0 %v601, 127
      %v1060 = vpop.permute.xlu0 %1059
      %1061 = vrot.lane.b32.xlu0 %v613, 127
      %v1062 = vpop.permute.xlu0 %1061
      %1063 = vrot.lane.b32.xlu0 %v615, 127
      %v1064 = vpop.permute.xlu0 %1063
      %1065 = vrot.lane.b32.xlu0 %v618, 127
      %v1066 = vpop.permute.xlu0 %1065
      %1067 = vrot.lane.b32.xlu0 %v620, 127
      %v1068 = vpop.permute.xlu0 %1067
      %vm1069 = vcmp.lt.s32.totalorder %v703, 127
      %v1070 = vsel %vm1069, %v1054, %v1062
      %v1071 = vsel %vm1069, %v1056, %v1064
      %v1072 = vsel %vm1069, %v1058, %v1066
      %v1073 = vsel %vm1069, %v1060, %v1068
      %v1074 = vsel %vm1069, %v1062, %v1054
      %v1075 = vsel %vm1069, %v1064, %v1056
      %v1076 = vsel %vm1069, %v1066, %v1058
      %v1077 = vsel %vm1069, %v1068, %v1060
      %v1078 = vadd.s32 %v533, 1
      %v1079 = vadd.s32 %v534, 1
      %vm1080 = vcmp.ge.s32.totalorder %v1078, 0
      %vm1081 = vcmp.ge.s32.totalorder %v1079, 0
      %vm1082 = vcmp.lt.s32.totalorder %v1078, 16
      %vm1083 = vcmp.lt.s32.totalorder %v1079, 16
      %vm1084 = vmand %vm1080, %vm1082
      %vm1085 = vmand %vm1081, %vm1083
      %v1086 = vsel %vm1084, %v1070, 0.0
      %v1087 = vsel %vm1085, %v1074, 0.0
      %v1088 = vsel %vm1084, %v1071, 0.0
      %v1089 = vsel %vm1085, %v1075, 0.0
      %v1090 = vsel %vm1084, %v1072, 0.0
      %v1091 = vsel %vm1085, %v1076, 0.0
      %v1092 = vsel %vm1084, %v1073, 0.0
      %v1093 = vsel %vm1085, %v1077, 0.0
      %1094 = vset.pattern.permute.xlu0 3
      %1095 = vperm.xlu0 %1094, %v626
      %v1096 = vpop.permute.xlu0 %1095
      %1098 = vset.pattern.permute.xlu0 3
      %1099 = vperm.xlu0 %1098, %v627
      %v1100 = vpop.permute.xlu0 %1099
      %1102 = vset.pattern.permute.xlu0 3
      %1103 = vperm.xlu0 %1102, %v628
      %v1104 = vpop.permute.xlu0 %1103
      %1106 = vset.pattern.permute.xlu0 3
      %1107 = vperm.xlu0 %1106, %v629
      %v1108 = vpop.permute.xlu0 %1107
      %v1110 = vmul.f32 %v1086, %v1096
      %v1111 = vmul.f32 %v1087, %v1096
      %v1112 = vmul.f32 %v1088, %v1100
      %v1113 = vmul.f32 %v1089, %v1100
      %v1114 = vmul.f32 %v1090, %v1104
      %v1115 = vmul.f32 %v1091, %v1104
      %v1116 = vmul.f32 %v1092, %v1108
      %v1117 = vmul.f32 %v1093, %v1108
      %v1118 = vadd.f32 %v972, %v1110
      %v1119 = vadd.f32 %v973, %v1111
      %v1120 = vadd.f32 %v974, %v1112
      %v1121 = vadd.f32 %v975, %v1113
      %v1122 = vadd.f32 %v976, %v1114
      %v1123 = vadd.f32 %v977, %v1115
      %v1124 = vadd.f32 %v978, %v1116
      %v1125 = vadd.f32 %v979, %v1117
      %1126 = vrot.lane.b32.xlu0 %v594, 96
      %v1127 = vpop.permute.xlu0 %1126
      %1128 = vrot.lane.b32.xlu0 %v596, 96
      %v1129 = vpop.permute.xlu0 %1128
      %1130 = vrot.lane.b32.xlu0 %v599, 96
      %v1131 = vpop.permute.xlu0 %1130
      %1132 = vrot.lane.b32.xlu0 %v601, 96
      %v1133 = vpop.permute.xlu0 %1132
      %1134 = vrot.lane.b32.xlu0 %v613, 96
      %v1135 = vpop.permute.xlu0 %1134
      %1136 = vrot.lane.b32.xlu0 %v615, 96
      %v1137 = vpop.permute.xlu0 %1136
      %1138 = vrot.lane.b32.xlu0 %v618, 96
      %v1139 = vpop.permute.xlu0 %1138
      %1140 = vrot.lane.b32.xlu0 %v620, 96
      %v1141 = vpop.permute.xlu0 %1140
      %vm1142 = vcmp.lt.s32.totalorder %v703, 96
      %v1143 = vsel %vm1142, %v1127, %v1135
      %v1144 = vsel %vm1142, %v1129, %v1137
      %v1145 = vsel %vm1142, %v1131, %v1139
      %v1146 = vsel %vm1142, %v1133, %v1141
      %v1147 = vsel %vm1142, %v1135, %v1127
      %v1148 = vsel %vm1142, %v1137, %v1129
      %v1149 = vsel %vm1142, %v1139, %v1131
      %v1150 = vsel %vm1142, %v1141, %v1133
      %v1151 = vadd.s32 %v530, 2
      %v1152 = vadd.s32 %v531, 2
      %vm1153 = vcmp.ge.s32.totalorder %v1151, 0
      %vm1154 = vcmp.ge.s32.totalorder %v1152, 0
      %vm1155 = vcmp.lt.s32.totalorder %v1151, 16
      %vm1156 = vcmp.lt.s32.totalorder %v1152, 16
      %vm1157 = vmand %vm1153, %vm1155
      %vm1158 = vmand %vm1154, %vm1156
      %v1159 = vsel %vm1157, %v1143, 0.0
      %v1160 = vsel %vm1158, %v1147, 0.0
      %v1161 = vsel %vm1157, %v1144, 0.0
      %v1162 = vsel %vm1158, %v1148, 0.0
      %v1163 = vsel %vm1157, %v1145, 0.0
      %v1164 = vsel %vm1158, %v1149, 0.0
      %v1165 = vsel %vm1157, %v1146, 0.0
      %v1166 = vsel %vm1158, %v1150, 0.0
      %1167 = vset.pattern.permute.xlu0 4
      %1168 = vperm.xlu0 %1167, %v622
      %v1169 = vpop.permute.xlu0 %1168
      %1171 = vset.pattern.permute.xlu0 4
      %1172 = vperm.xlu0 %1171, %v623
      %v1173 = vpop.permute.xlu0 %1172
      %1175 = vset.pattern.permute.xlu0 4
      %1176 = vperm.xlu0 %1175, %v624
      %v1177 = vpop.permute.xlu0 %1176
      %1179 = vset.pattern.permute.xlu0 4
      %1180 = vperm.xlu0 %1179, %v625
      %v1181 = vpop.permute.xlu0 %1180
      %v1183 = vmul.f32 %v1159, %v1169
      %v1184 = vmul.f32 %v1160, %v1169
      %v1185 = vmul.f32 %v1161, %v1173
      %v1186 = vmul.f32 %v1162, %v1173
      %v1187 = vmul.f32 %v1163, %v1177
      %v1188 = vmul.f32 %v1164, %v1177
      %v1189 = vmul.f32 %v1165, %v1181
      %v1190 = vmul.f32 %v1166, %v1181
      %v1191 = vadd.f32 %v1045, %v1183
      %v1192 = vadd.f32 %v1046, %v1184
      %v1193 = vadd.f32 %v1047, %v1185
      %v1194 = vadd.f32 %v1048, %v1186
      %v1195 = vadd.f32 %v1049, %v1187
      %v1196 = vadd.f32 %v1050, %v1188
      %v1197 = vadd.f32 %v1051, %v1189
      %v1198 = vadd.f32 %v1052, %v1190
      %1199 = vrot.lane.b32.xlu0 %v594, 126
      %v1200 = vpop.permute.xlu0 %1199
      %1201 = vrot.lane.b32.xlu0 %v596, 126
      %v1202 = vpop.permute.xlu0 %1201
      %1203 = vrot.lane.b32.xlu0 %v599, 126
      %v1204 = vpop.permute.xlu0 %1203
      %1205 = vrot.lane.b32.xlu0 %v601, 126
      %v1206 = vpop.permute.xlu0 %1205
      %1207 = vrot.lane.b32.xlu0 %v613, 126
      %v1208 = vpop.permute.xlu0 %1207
      %1209 = vrot.lane.b32.xlu0 %v615, 126
      %v1210 = vpop.permute.xlu0 %1209
      %1211 = vrot.lane.b32.xlu0 %v618, 126
      %v1212 = vpop.permute.xlu0 %1211
      %1213 = vrot.lane.b32.xlu0 %v620, 126
      %v1214 = vpop.permute.xlu0 %1213
      %vm1215 = vcmp.lt.s32.totalorder %v703, 126
      %v1216 = vsel %vm1215, %v1200, %v1208
      %v1217 = vsel %vm1215, %v1202, %v1210
      %v1218 = vsel %vm1215, %v1204, %v1212
      %v1219 = vsel %vm1215, %v1206, %v1214
      %v1220 = vsel %vm1215, %v1208, %v1200
      %v1221 = vsel %vm1215, %v1210, %v1202
      %v1222 = vsel %vm1215, %v1212, %v1204
      %v1223 = vsel %vm1215, %v1214, %v1206
      %v1224 = vadd.s32 %v533, 2
      %v1225 = vadd.s32 %v534, 2
      %vm1226 = vcmp.ge.s32.totalorder %v1224, 0
      %vm1227 = vcmp.ge.s32.totalorder %v1225, 0
      %vm1228 = vcmp.lt.s32.totalorder %v1224, 16
      %vm1229 = vcmp.lt.s32.totalorder %v1225, 16
      %vm1230 = vmand %vm1226, %vm1228
      %vm1231 = vmand %vm1227, %vm1229
      %v1232 = vsel %vm1230, %v1216, 0.0
      %v1233 = vsel %vm1231, %v1220, 0.0
      %v1234 = vsel %vm1230, %v1217, 0.0
      %v1235 = vsel %vm1231, %v1221, 0.0
      %v1236 = vsel %vm1230, %v1218, 0.0
      %v1237 = vsel %vm1231, %v1222, 0.0
      %v1238 = vsel %vm1230, %v1219, 0.0
      %v1239 = vsel %vm1231, %v1223, 0.0
      %1240 = vset.pattern.permute.xlu0 4
      %1241 = vperm.xlu0 %1240, %v626
      %v1242 = vpop.permute.xlu0 %1241
      %1244 = vset.pattern.permute.xlu0 4
      %1245 = vperm.xlu0 %1244, %v627
      %v1246 = vpop.permute.xlu0 %1245
      %1248 = vset.pattern.permute.xlu0 4
      %1249 = vperm.xlu0 %1248, %v628
      %v1250 = vpop.permute.xlu0 %1249
      %1252 = vset.pattern.permute.xlu0 4
      %1253 = vperm.xlu0 %1252, %v629
      %v1254 = vpop.permute.xlu0 %1253
      %v1256 = vmul.f32 %v1232, %v1242
      %v1257 = vmul.f32 %v1233, %v1242
      %v1258 = vmul.f32 %v1234, %v1246
      %v1259 = vmul.f32 %v1235, %v1246
      %v1260 = vmul.f32 %v1236, %v1250
      %v1261 = vmul.f32 %v1237, %v1250
      %v1262 = vmul.f32 %v1238, %v1254
      %v1263 = vmul.f32 %v1239, %v1254
      %v1264 = vadd.f32 %v1118, %v1256
      %v1265 = vadd.f32 %v1119, %v1257
      %v1266 = vadd.f32 %v1120, %v1258
      %v1267 = vadd.f32 %v1121, %v1259
      %v1268 = vadd.f32 %v1122, %v1260
      %v1269 = vadd.f32 %v1123, %v1261
      %v1270 = vadd.f32 %v1124, %v1262
      %v1271 = vadd.f32 %v1125, %v1263
      %v1272 = vld [vmem:[%s6] sm:$0xff]
      %v1273 = vld [vmem:[%s6 + $0x8] sm:$0xff]
      %v1274 = vld [vmem:[%s6 + $0x10] sm:$0xff]
      %v1275 = vld [vmem:[%s6 + $0x18] sm:$0xff]
      %1277 = vset.pattern.permute.xlu0 0
      %1278 = vperm.xlu0 %1277, %v1272
      %v1279 = vpop.permute.xlu0 %1278
      %1282 = vset.pattern.permute.xlu0 0
      %1283 = vperm.xlu0 %1282, %v1273
      %v1284 = vpop.permute.xlu0 %1283
      %1287 = vset.pattern.permute.xlu0 0
      %1288 = vperm.xlu0 %1287, %v1274
      %v1289 = vpop.permute.xlu0 %1288
      %1292 = vset.pattern.permute.xlu0 0
      %1293 = vperm.xlu0 %1292, %v1275
      %v1294 = vpop.permute.xlu0 %1293
      %v1296 = vadd.f32 %v1191, %v1279
      %v1297 = vadd.f32 %v1192, %v1279
      %v1298 = vadd.f32 %v1193, %v1284
      %v1299 = vadd.f32 %v1194, %v1284
      %v1300 = vadd.f32 %v1195, %v1289
      %v1301 = vadd.f32 %v1196, %v1289
      %v1302 = vadd.f32 %v1197, %v1294
      %v1303 = vadd.f32 %v1198, %v1294
      %v1304 = vld [vmem:[%s8] sm:$0xff]
      %v1305 = vld [vmem:[%s8 + $0x8] sm:$0xff]
      %v1306 = vld [vmem:[%s8 + $0x10] sm:$0xff]
      %v1307 = vld [vmem:[%s8 + $0x18] sm:$0xff]
      %1309 = vset.pattern.permute.xlu0 0
      %1310 = vperm.xlu0 %1309, %v1304
      %v1311 = vpop.permute.xlu0 %1310
      %1314 = vset.pattern.permute.xlu0 0
      %1315 = vperm.xlu0 %1314, %v1305
      %v1316 = vpop.permute.xlu0 %1315
      %1319 = vset.pattern.permute.xlu0 0
      %1320 = vperm.xlu0 %1319, %v1306
      %v1321 = vpop.permute.xlu0 %1320
      %1324 = vset.pattern.permute.xlu0 0
      %1325 = vperm.xlu0 %1324, %v1307
      %v1326 = vpop.permute.xlu0 %1325
      %v1328 = vadd.f32 %v1264, %v1311
      %v1329 = vadd.f32 %v1265, %v1311
      %v1330 = vadd.f32 %v1266, %v1316
      %v1331 = vadd.f32 %v1267, %v1316
      %v1332 = vadd.f32 %v1268, %v1321
      %v1333 = vadd.f32 %v1269, %v1321
      %v1334 = vadd.f32 %v1270, %v1326
      %v1335 = vadd.f32 %v1271, %v1326
      %v1336 = vpack.c.bf16 %v1330, %v1328
      %v1337 = vpack.c.bf16 %v1331, %v1329
      %v1338 = vpack.c.bf16 %v1334, %v1332
      %v1339 = vpack.c.bf16 %v1335, %v1333
      %v1340 = vpack.c.bf16 %v1298, %v1296
      %v1341 = vpack.c.bf16 %v1299, %v1297
      %v1342 = vpack.c.bf16 %v1302, %v1300
      %v1343 = vpack.c.bf16 %v1303, %v1301
      %v1344 = vld [vmem:[%s9] sm:$0xf]
      %v1345 = vld [vmem:[%s9 + $0x4] sm:$0xf]
      %v1346 = vld [vmem:[%s9 + $0x8] sm:$0xf]
      %v1347 = vld [vmem:[%s9 + $0xc] sm:$0xf]
      %v1348 = vld [vmem:[%s9 + $0x10] sm:$0xf]
      %v1349 = vld [vmem:[%s9 + $0x14] sm:$0xf]
      %v1350 = vld [vmem:[%s9 + $0x18] sm:$0xf]
      %v1351 = vld [vmem:[%s9 + $0x1c] sm:$0xf]
      %v1352 = vld [vmem:[%s10] sm:$0xff]
      %v1353 = vld [vmem:[%s10 + $0x8] sm:$0xff]
      %v1354 = vld [vmem:[%s10 + $0x10] sm:$0xff]
      %v1355 = vld [vmem:[%s10 + $0x18] sm:$0xff]
      %v1356 = vld [vmem:[%s10 + $0x20] sm:$0xff]
      %v1357 = vld [vmem:[%s10 + $0x28] sm:$0xff]
      %v1358 = vld [vmem:[%s10 + $0x30] sm:$0xff]
      %v1359 = vld [vmem:[%s10 + $0x38] sm:$0xff]
      %1361 = vset.pattern.permute.xlu0 0
      %1362 = vperm.xlu0 %1361, %v1352
      %v1363 = vpop.permute.xlu0 %1362
      %1366 = vset.pattern.permute.xlu0 0
      %1367 = vperm.xlu0 %1366, %v1353
      %v1368 = vpop.permute.xlu0 %1367
      %1371 = vset.pattern.permute.xlu0 0
      %1372 = vperm.xlu0 %1371, %v1354
      %v1373 = vpop.permute.xlu0 %1372
      %1376 = vset.pattern.permute.xlu0 0
      %1377 = vperm.xlu0 %1376, %v1355
      %v1378 = vpop.permute.xlu0 %1377
      %1381 = vset.pattern.permute.xlu0 0
      %1382 = vperm.xlu0 %1381, %v1356
      %v1383 = vpop.permute.xlu0 %1382
      %1386 = vset.pattern.permute.xlu0 0
      %1387 = vperm.xlu0 %1386, %v1357
      %v1388 = vpop.permute.xlu0 %1387
      %1391 = vset.pattern.permute.xlu0 0
      %1392 = vperm.xlu0 %1391, %v1358
      %v1393 = vpop.permute.xlu0 %1392
      %1396 = vset.pattern.permute.xlu0 0
      %1397 = vperm.xlu0 %1396, %v1359
      %v1398 = vpop.permute.xlu0 %1397
      %v1408 = vunpack.c.l.b16 %v1344
      %v1409 = vunpack.c.l.b16 %v1345
      %v1410 = vunpack.c.l.b16 %v1346
      %v1411 = vunpack.c.l.b16 %v1347
      %v1412 = vunpack.c.l.b16 %v1348
      %v1413 = vunpack.c.l.b16 %v1349
      %v1414 = vunpack.c.l.b16 %v1350
      %v1415 = vunpack.c.l.b16 %v1351
      %v1416 = vpack.c.b16 %v1409, %v1408
      %v1417 = vpack.c.b16 %v1411, %v1410
      %v1418 = vpack.c.b16 %v1413, %v1412
      %v1419 = vpack.c.b16 %v1415, %v1414
      %vm1420 = vcmask 523264
      %v1422 = vsel %vm1420, %v1416, 0
      %v1425 = vsel %vm1420, %v1417, 0
      %v1428 = vsel %vm1420, %v1418, 0
      %v1431 = vsel %vm1420, %v1419, 0
      %1433 = vmatpush.bf16.msra.mxu0 0
      %1434 = vmatpush.bf16.msra.mxu0 0
      %1435 = vmatpush.bf16.msra.mxu0 0
      %1436 = vmatpush.bf16.msra.mxu0 0
      %1437 = vmatpush.bf16.msra.mxu0 %v1342
      %1438 = vmatpush.bf16.msra.mxu0 %v1340
      %1439 = vmatpush.bf16.msra.mxu0 %v1338
      %1440 = vmatpush.bf16.msra.mxu0 %v1336
      %1441 = vmatmul.bf16.gmra.mxu0 %v1422
      %v1442 = vpop.f32.mrf.mxu0
      %v1443 = vadd.f32 %v1363, %v1442
      %v1444 = vpop.f32.mrf.mxu0
      %v1445 = vadd.f32 %v1368, %v1444
      %1446 = vmatmul.bf16.gmra.mxu0 %v1425
      %v1447 = vpop.f32.mrf.mxu0
      %v1448 = vadd.f32 %v1373, %v1447
      %v1449 = vpop.f32.mrf.mxu0
      %v1450 = vadd.f32 %v1378, %v1449
      %1451 = vmatmul.bf16.gmra.mxu0 %v1428
      %v1452 = vpop.f32.mrf.mxu0
      %v1453 = vadd.f32 %v1383, %v1452
      %v1454 = vpop.f32.mrf.mxu0
      %v1455 = vadd.f32 %v1388, %v1454
      %1456 = vmatmul.bf16.gmra.mxu0 %v1431
      %v1457 = vpop.f32.mrf.mxu0
      %v1458 = vadd.f32 %v1393, %v1457
      %v1459 = vpop.f32.mrf.mxu0
      %v1460 = vadd.f32 %v1398, %v1459
      %1461 = vdwg.mxu0
      %1462 = vmatpush.bf16.msra.mxu0 0
      %1463 = vmatpush.bf16.msra.mxu0 0
      %1464 = vmatpush.bf16.msra.mxu0 0
      %1465 = vmatpush.bf16.msra.mxu0 0
      %1466 = vmatpush.bf16.msra.mxu0 %v1343
      %1467 = vmatpush.bf16.msra.mxu0 %v1341
      %1468 = vmatpush.bf16.msra.mxu0 %v1339
      %1469 = vmatpush.bf16.msra.mxu0 %v1337
      %1470 = vmatmul.bf16.gmra.mxu0 %v1422
      %v1471 = vpop.f32.mrf.mxu0
      %v1472 = vadd.f32 %v1363, %v1471
      %v1473 = vpop.f32.mrf.mxu0
      %v1474 = vadd.f32 %v1368, %v1473
      %1475 = vmatmul.bf16.gmra.mxu0 %v1425
      %v1476 = vpop.f32.mrf.mxu0
      %v1477 = vadd.f32 %v1373, %v1476
      %v1478 = vpop.f32.mrf.mxu0
      %v1479 = vadd.f32 %v1378, %v1478
      %1480 = vmatmul.bf16.gmra.mxu0 %v1428
      %v1481 = vpop.f32.mrf.mxu0
      %v1482 = vadd.f32 %v1383, %v1481
      %v1483 = vpop.f32.mrf.mxu0
      %v1484 = vadd.f32 %v1388, %v1483
      %1485 = vmatmul.bf16.gmra.mxu0 %v1431
      %v1486 = vpop.f32.mrf.mxu0
      %v1487 = vadd.f32 %v1393, %v1486
      %v1488 = vpop.f32.mrf.mxu0
      %v1489 = vadd.f32 %v1398, %v1488
      %1490 = vdwg.mxu0
      %v1491 = vmul.f32 %v1443, 0.5
      %v1492 = vmul.f32 %v1472, 0.5
      %v1493 = vmul.f32 %v1445, 0.5
      %v1494 = vmul.f32 %v1474, 0.5
      %v1495 = vmul.f32 %v1448, 0.5
      %v1496 = vmul.f32 %v1477, 0.5
      %v1497 = vmul.f32 %v1450, 0.5
      %v1498 = vmul.f32 %v1479, 0.5
      %v1499 = vmul.f32 %v1453, 0.5
      %v1500 = vmul.f32 %v1482, 0.5
      %v1501 = vmul.f32 %v1455, 0.5
      %v1502 = vmul.f32 %v1484, 0.5
      %v1503 = vmul.f32 %v1458, 0.5
      %v1504 = vmul.f32 %v1487, 0.5
      %v1505 = vmul.f32 %v1460, 0.5
      %v1506 = vmul.f32 %v1489, 0.5
      %v1507 = vtanh.pop %v1491
      %v1508 = vtanh.pop %v1492
      %v1509 = vtanh.pop %v1493
      %v1510 = vtanh.pop %v1494
      %v1511 = vtanh.pop %v1495
      %v1512 = vtanh.pop %v1496
      %v1513 = vtanh.pop %v1497
      %v1514 = vtanh.pop %v1498
      %v1515 = vtanh.pop %v1499
      %v1516 = vtanh.pop %v1500
      %v1517 = vtanh.pop %v1501
      %v1518 = vtanh.pop %v1502
      %v1519 = vtanh.pop %v1503
      %v1520 = vtanh.pop %v1504
      %v1521 = vtanh.pop %v1505
      %v1522 = vtanh.pop %v1506
      %v1523 = vadd.f32 %v1507, 1.0
      %v1524 = vadd.f32 %v1508, 1.0
      %v1525 = vadd.f32 %v1509, 1.0
      %v1526 = vadd.f32 %v1510, 1.0
      %v1527 = vadd.f32 %v1511, 1.0
      %v1528 = vadd.f32 %v1512, 1.0
      %v1529 = vadd.f32 %v1513, 1.0
      %v1530 = vadd.f32 %v1514, 1.0
      %v1531 = vadd.f32 %v1515, 1.0
      %v1532 = vadd.f32 %v1516, 1.0
      %v1533 = vadd.f32 %v1517, 1.0
      %v1534 = vadd.f32 %v1518, 1.0
      %v1535 = vadd.f32 %v1519, 1.0
      %v1536 = vadd.f32 %v1520, 1.0
      %v1537 = vadd.f32 %v1521, 1.0
      %v1538 = vadd.f32 %v1522, 1.0
      %v1539 = vmul.f32 %v1523, 0.5
      %v1540 = vmul.f32 %v1524, 0.5
      %v1541 = vmul.f32 %v1525, 0.5
      %v1542 = vmul.f32 %v1526, 0.5
      %v1543 = vmul.f32 %v1527, 0.5
      %v1544 = vmul.f32 %v1528, 0.5
      %v1545 = vmul.f32 %v1529, 0.5
      %v1546 = vmul.f32 %v1530, 0.5
      %v1547 = vmul.f32 %v1531, 0.5
      %v1548 = vmul.f32 %v1532, 0.5
      %v1549 = vmul.f32 %v1533, 0.5
      %v1550 = vmul.f32 %v1534, 0.5
      %v1551 = vmul.f32 %v1535, 0.5
      %v1552 = vmul.f32 %v1536, 0.5
      %v1553 = vmul.f32 %v1537, 0.5
      %v1554 = vmul.f32 %v1538, 0.5
      %v1555 = vmul.f32 %v1296, %v1539
      %v1556 = vmul.f32 %v1297, %v1540
      %v1557 = vmul.f32 %v1298, %v1541
      %v1558 = vmul.f32 %v1299, %v1542
      %v1559 = vmul.f32 %v1300, %v1543
      %v1560 = vmul.f32 %v1301, %v1544
      %v1561 = vmul.f32 %v1302, %v1545
      %v1562 = vmul.f32 %v1303, %v1546
      %v1563 = vmul.f32 %v1328, %v1547
      %v1564 = vmul.f32 %v1329, %v1548
      %v1565 = vmul.f32 %v1330, %v1549
      %v1566 = vmul.f32 %v1331, %v1550
      %v1567 = vmul.f32 %v1332, %v1551
      %v1568 = vmul.f32 %v1333, %v1552
      %v1569 = vmul.f32 %v1334, %v1553
      %v1570 = vmul.f32 %v1335, %v1554
      %v1571 = vadd.f32 %v1555, %v1563
      %v1572 = vadd.f32 %v1556, %v1564
      %v1573 = vadd.f32 %v1557, %v1565
      %v1574 = vadd.f32 %v1558, %v1566
      %v1575 = vadd.f32 %v1559, %v1567
      %v1576 = vadd.f32 %v1560, %v1568
      %v1577 = vadd.f32 %v1561, %v1569
      %v1578 = vadd.f32 %v1562, %v1570
      %v1579 = vld [vmem:[%s11] sm:$0xf]
      %v1580 = vld [vmem:[%s11 + $0x4] sm:$0xf]
      %v1581 = vld [vmem:[%s11 + $0x8] sm:$0xf]
      %v1582 = vld [vmem:[%s11 + $0xc] sm:$0xf]
      %v1583 = vpack.c.bf16 %v1573, %v1571
      %v1584 = vpack.c.bf16 %v1574, %v1572
      %v1585 = vpack.c.bf16 %v1577, %v1575
      %v1586 = vpack.c.bf16 %v1578, %v1576
      %v1587 = vld [vmem:[%s12] sm:$0xff]
      %v1588 = vld [vmem:[%s12 + $0x8] sm:$0xff]
      %v1589 = vld [vmem:[%s12 + $0x10] sm:$0xff]
      %v1590 = vld [vmem:[%s12 + $0x18] sm:$0xff]
      %1592 = vset.pattern.permute.xlu0 0
      %1593 = vperm.xlu0 %1592, %v1587
      %v1594 = vpop.permute.xlu0 %1593
      %1597 = vset.pattern.permute.xlu0 0
      %1598 = vperm.xlu0 %1597, %v1588
      %v1599 = vpop.permute.xlu0 %1598
      %1602 = vset.pattern.permute.xlu0 0
      %1603 = vperm.xlu0 %1602, %v1589
      %v1604 = vpop.permute.xlu0 %1603
      %1607 = vset.pattern.permute.xlu0 0
      %1608 = vperm.xlu0 %1607, %v1590
      %v1609 = vpop.permute.xlu0 %1608
      %v1615 = vunpack.c.l.b16 %v1579
      %v1616 = vunpack.c.l.b16 %v1580
      %v1617 = vunpack.c.l.b16 %v1581
      %v1618 = vunpack.c.l.b16 %v1582
      %v1619 = vpack.c.b16 %v1616, %v1615
      %v1620 = vpack.c.b16 %v1618, %v1617
      %v1622 = vsel %vm577, %v1619, 0
      %v1625 = vsel %vm577, %v1620, 0
      %1627 = vmatpush.bf16.msra.mxu0 0
      %1628 = vmatpush.bf16.msra.mxu0 0
      %1629 = vmatpush.bf16.msra.mxu0 0
      %1630 = vmatpush.bf16.msra.mxu0 0
      %1631 = vmatpush.bf16.msra.mxu0 0
      %1632 = vmatpush.bf16.msra.mxu0 0
      %1633 = vmatpush.bf16.msra.mxu0 %v1585
      %1634 = vmatpush.bf16.msra.mxu0 %v1583
      %1635 = vmatmul.bf16.gmra.mxu0 %v1622
      %v1636 = vpop.f32.mrf.mxu0
      %v1637 = vadd.f32 %v1594, %v1636
      %v1638 = vpop.f32.mrf.mxu0
      %v1639 = vadd.f32 %v1599, %v1638
      %1640 = vmatmul.bf16.gmra.mxu0 %v1625
      %v1641 = vpop.f32.mrf.mxu0
      %v1642 = vadd.f32 %v1604, %v1641
      %v1643 = vpop.f32.mrf.mxu0
      %v1644 = vadd.f32 %v1609, %v1643
      %1645 = vdwg.mxu0
      %1646 = vmatpush.bf16.msra.mxu0 0
      %1647 = vmatpush.bf16.msra.mxu0 0
      %1648 = vmatpush.bf16.msra.mxu0 0
      %1649 = vmatpush.bf16.msra.mxu0 0
      %1650 = vmatpush.bf16.msra.mxu0 0
      %1651 = vmatpush.bf16.msra.mxu0 0
      %1652 = vmatpush.bf16.msra.mxu0 %v1586
      %1653 = vmatpush.bf16.msra.mxu0 %v1584
      %1654 = vmatmul.bf16.gmra.mxu0 %v1622
      %v1655 = vpop.f32.mrf.mxu0
      %v1656 = vadd.f32 %v1594, %v1655
      %v1657 = vpop.f32.mrf.mxu0
      %v1658 = vadd.f32 %v1599, %v1657
      %1659 = vmatmul.bf16.gmra.mxu0 %v1625
      %v1660 = vpop.f32.mrf.mxu0
      %v1661 = vadd.f32 %v1604, %v1660
      %v1662 = vpop.f32.mrf.mxu0
      %v1663 = vadd.f32 %v1609, %v1662
      %1664 = vdwg.mxu0
      %v1665 = vadd.f32 %v1637, %v521
      %v1666 = vadd.f32 %v1656, %v522
      %v1667 = vadd.f32 %v1639, %v523
      %v1668 = vadd.f32 %v1658, %v524
      %v1669 = vadd.f32 %v1642, %v525
      %v1670 = vadd.f32 %v1661, %v526
      %v1671 = vadd.f32 %v1644, %v527
      %v1672 = vadd.f32 %v1663, %v528
      %1673 = vst [vmem:[%s509] sm:$0xff] %v1665
      %1674 = vst [vmem:[%s509 + $0x8] sm:$0xff] %v1666
      %1675 = vst [vmem:[%s509 + $0x10] sm:$0xff] %v1667
      %1676 = vst [vmem:[%s509 + $0x18] sm:$0xff] %v1668
      %1677 = vst [vmem:[%s509 + $0x20] sm:$0xff] %v1669
      %1678 = vst [vmem:[%s509 + $0x28] sm:$0xff] %v1670
      %1679 = vst [vmem:[%s509 + $0x30] sm:$0xff] %v1671
      %1680 = vst [vmem:[%s509 + $0x38] sm:$0xff] %v1672
      %v1681 = vadd.f32 %v1665, %v1666
      %1682 = vadd.xlane.f32.xlu0 %v1681
      %v1683 = vpop.xlane.xlu0 %1682
      %v1684 = vadd.f32 %v1667, %v1668
      %1685 = vadd.xlane.f32.xlu0 %v1684
      %v1686 = vpop.xlane.xlu0 %1685
      %v1687 = vadd.f32 %v1669, %v1670
      %1688 = vadd.xlane.f32.xlu0 %v1687
      %v1689 = vpop.xlane.xlu0 %1688
      %v1690 = vadd.f32 %v1671, %v1672
      %1691 = vadd.xlane.f32.xlu0 %v1690
      %v1692 = vpop.xlane.xlu0 %1691
      %vm1693 = vcmask 7168
      %1694 = vst.msk [vmem:[%s514] sm:$0xff] %vm1693, %v1683
      %1695 = vst.msk [vmem:[%s514 + $0x8] sm:$0xff] %vm1693, %v1686
      %1696 = vst.msk [vmem:[%s514 + $0x10] sm:$0xff] %vm1693, %v1689
      %1697 = vst.msk [vmem:[%s514 + $0x18] sm:$0xff] %vm1693, %v1692
      %v1698 = vmul.f32 %v1665, %v1665
      %v1699 = vmul.f32 %v1666, %v1666
      %v1700 = vmul.f32 %v1667, %v1667
      %v1701 = vmul.f32 %v1668, %v1668
      %v1702 = vmul.f32 %v1669, %v1669
      %v1703 = vmul.f32 %v1670, %v1670
      %v1704 = vmul.f32 %v1671, %v1671
      %v1705 = vmul.f32 %v1672, %v1672
      %v1706 = vadd.f32 %v1698, %v1699
      %1707 = vadd.xlane.f32.xlu0 %v1706
      %v1708 = vpop.xlane.xlu0 %1707
      %v1709 = vadd.f32 %v1700, %v1701
      %1710 = vadd.xlane.f32.xlu0 %v1709
      %v1711 = vpop.xlane.xlu0 %1710
      %v1712 = vadd.f32 %v1702, %v1703
      %1713 = vadd.xlane.f32.xlu0 %v1712
      %v1714 = vpop.xlane.xlu0 %1713
      %v1715 = vadd.f32 %v1704, %v1705
      %1716 = vadd.xlane.f32.xlu0 %v1715
      %v1717 = vpop.xlane.xlu0 %1716
      %1718 = vst.msk [vmem:[%s519] sm:$0xff] %vm1693, %v1708
      %1719 = vst.msk [vmem:[%s519 + $0x8] sm:$0xff] %vm1693, %v1711
      %1720 = vst.msk [vmem:[%s519 + $0x10] sm:$0xff] %vm1693, %v1714
      %1721 = vst.msk [vmem:[%s519 + $0x18] sm:$0xff] %vm1693, %v1717
      %p1722 = scmp.lt.s32.totalorder %s27, 1
      %s1723 = scalar_select %p1722, %s27, 1
      %s1724 = smul.addr %s1723, 8
      %s1725 = smul.addr %s1724, 8
      %s1726 = scalar_lea.vmem %s13, %s1725
      %p1727 = scmp.lt.s32.totalorder %s27, 1
      %s1728 = scalar_select %p1727, %s27, 1
      %s1729 = smul.addr %s1728, 4
      %s1730 = smul.addr %s1729, 8
      %s1731 = scalar_lea.vmem %s14, %s1730
      %p1732 = scmp.lt.s32.totalorder %s27, 1
      %s1733 = scalar_select %p1732, %s27, 1
      %s1734 = smul.addr %s1733, 4
      %s1735 = smul.addr %s1734, 8
      %s1736 = scalar_lea.vmem %s15, %s1735
      // Predicated region
      $region73: #{mh_mamba_block.2} parent=71 // pred_check
        %p1737 = pneg %p323
      $region74: #{mh_mamba_block.2} parent=71 // pred_check_branch
        %1739 = sbr.rel (%p1737) target = $region76
      $region75: #{mh_mamba_block.2} parent=71 // pred_region
        _
      $region76: #{mh_mamba_block.2} parent=71 // pred_fallthru
        _
      // Predicated region
      $region77: #{mh_mamba_block.2} parent=71 // pred_check
        %p1740 = pneg %p349
      $region78: #{mh_mamba_block.2} parent=71 // pred_check_branch
        %1742 = sbr.rel (%p1740) target = $region80
      $region79: #{mh_mamba_block.2} parent=71 // pred_region
        _
      $region80: #{mh_mamba_block.2} parent=71 // pred_fallthru
        _
      // Predicated region
      $region81: #{mh_mamba_block.2} parent=71 // pred_check
        %p1743 = pneg %p375
      $region82: #{mh_mamba_block.2} parent=71 // pred_check_branch
        %1745 = sbr.rel (%p1743) target = $region84
      $region83: #{mh_mamba_block.2} parent=71 // pred_region
        _
      $region84: #{mh_mamba_block.2} parent=71 // pred_fallthru
        _
    $region72: #{mh_mamba_block.2} parent=5 // pred_fallthru
      _
    %p1746 = scmp.le.s32.totalorder 2, %s22
    // Predicated region
    $region85: #{mh_mamba_block.2} parent=5 // pred_check
      %p1747 = pneg %p1746
    $region86: #{mh_mamba_block.2} parent=5 // pred_check_branch
      %1749 = sbr.rel (%p1747) target = $region88
    $region87: #{mh_mamba_block.2} parent=5 // pred_region
      %s1750 = ssub.s32 %s22, 2
      // Predicated region
      $region89: #{mh_mamba_block.2} parent=87 // pred_check
        %p1751 = pneg %p329
      $region90: #{mh_mamba_block.2} parent=87 // pred_check_branch
        %1753 = sbr.rel (%p1751) target = $region92
      $region91: #{mh_mamba_block.2} parent=87 // pred_region
        %p1754 = scmp.lt.s32.totalorder %s28, 1
        %s1755 = scalar_select %p1754, %s28, 1
        %s1756 = smul.addr %s1755, 8
        %s1757 = smul.addr %s1756, 8
        %s1758 = scalar_lea.vmem %s13, %s1757
      $region92: #{mh_mamba_block.2} parent=87 // pred_fallthru
        _
      // Predicated region
      $region93: #{mh_mamba_block.2} parent=87 // pred_check
        %p1759 = pneg %p355
      $region94: #{mh_mamba_block.2} parent=87 // pred_check_branch
        %1761 = sbr.rel (%p1759) target = $region96
      $region95: #{mh_mamba_block.2} parent=87 // pred_region
        %p1762 = scmp.lt.s32.totalorder %s28, 1
        %s1763 = scalar_select %p1762, %s28, 1
        %s1764 = smul.addr %s1763, 4
        %s1765 = smul.addr %s1764, 8
        %s1766 = scalar_lea.vmem %s14, %s1765
      $region96: #{mh_mamba_block.2} parent=87 // pred_fallthru
        _
      // Predicated region
      $region97: #{mh_mamba_block.2} parent=87 // pred_check
        %p1767 = pneg %p381
      $region98: #{mh_mamba_block.2} parent=87 // pred_check_branch
        %1769 = sbr.rel (%p1767) target = $region100
      $region99: #{mh_mamba_block.2} parent=87 // pred_region
        %p1770 = scmp.lt.s32.totalorder %s28, 1
        %s1771 = scalar_select %p1770, %s28, 1
        %s1772 = smul.addr %s1771, 4
        %s1773 = smul.addr %s1772, 8
        %s1774 = scalar_lea.vmem %s15, %s1773
      $region100: #{mh_mamba_block.2} parent=87 // pred_fallthru
        _
    $region88: #{mh_mamba_block.2} parent=5 // pred_fallthru
      _
  $region6: #{mh_mamba_block.2} parent=0 // loop_footer
    %s26 = sadd.s32 1, %s22
  $region7: #{mh_mamba_block.2} parent=0 // loop_footer_branch
    %21 = sbr.rel target = $region3
  $region8: #{mh_mamba_block.2} parent=0 // loop_exit
    _

</llo_original>
